<compile_context>
chip_gen: v7x
topology: tpu7x:2x2x1
jax: 0.10.0
libtpu: 0.0.40
codegen_flags: <defaults>
</compile_context>

<pallas_src>
import math
import functools
import numpy as np
import jax
import jax.numpy as jnp
from jax.experimental import pallas as pl
from jax.experimental.pallas import tpu as pltpu


def _round_up(n, m):
    return ((n + m - 1) // m) * m


# ----------------------------------------------------------------------------
# Clenshaw–Curtis weights / abscissae (verbatim port of UMNN compute_cc_weights)
# ----------------------------------------------------------------------------
def compute_cc_weights(nb_steps):
    lam = np.arange(0, nb_steps + 1, 1).reshape(-1, 1)
    lam = np.cos((lam @ lam.T) * math.pi / nb_steps)
    lam[:, 0] = 0.5
    lam[:, -1] = 0.5 * lam[:, -1]
    lam = lam * 2 / nb_steps
    W = np.arange(0, nb_steps + 1, 1).reshape(-1, 1)
    W[np.arange(1, nb_steps + 1, 2)] = 0
    W = 2 / (1 - W ** 2)
    W[0] = 1
    W[np.arange(1, nb_steps + 1, 2)] = 0
    cc_weights = (lam.T @ W).astype(np.float32).reshape(-1)             # [N+1]
    steps = np.cos(np.arange(0, nb_steps + 1, 1) * math.pi / nb_steps)  # [N+1]
    return cc_weights, steps.astype(np.float32)


# ----------------------------------------------------------------------------
# One-time packing of parameters + quadrature tables into lane-dense operands.
# ----------------------------------------------------------------------------
def pack_inputs(params, nb_steps):
    (iw1, ib1, iw2, ib2, iw3, ib3,
     nw1, nb1, nw2, nb2, nw3, nb3) = [np.asarray(p, np.float32) for p in params]
    D, H1 = nw1.shape
    H2 = nw2.shape[1]
    assert iw1.shape == (2, H1) and iw2.shape == (H1, H2) and iw3.shape == (H2, 1)
    assert max(H1, H2) <= 128, "hidden width must be <= 128 for lane packing"
    LW = 128                                   # packed lane width
    NPACK = max(1, LW // max(H1, H2))          # how many 'problems' share the lanes

    # --- quadrature tables, node n -> (group g = n // R, row r = n % R) -------
    cc_w, steps = compute_cc_weights(nb_steps)
    Np1 = nb_steps + 1
    R = _round_up(-(-Np1 // NPACK), 8)         # node rows (padded to 8 sublanes)
    s_tab = np.zeros((R, 1, LW), np.float32)   # pre-scaled abscissae, replicated per group
    w_tab = np.zeros((R, 1, NPACK), np.float32)
    for n in range(Np1):
        g, r = divmod(n, R)
        s_tab[r, 0, g * H1:(g + 1) * H1] = (steps[n] + 1.0) * 0.5
        w_tab[r, 0, g] = cc_w[n]               # padded nodes keep weight 0

    # --- row-vector slab [8, LW]: biases + 1-wide weight columns --------------
    # iw1[0, :] (the x-feature row of Linear(2,H)) is valid only because
    # add_condition_to_integrand=False, i.e. the second integrand input is 0.
    vecs = np.zeros((8, LW), np.float32)
    for g in range(NPACK):
        vecs[0, g * H1:(g + 1) * H1] = iw1[0, :]          # integrand L1 weight (x col), tiled
        vecs[1, g * H1:(g + 1) * H1] = ib1.reshape(-1)    # integrand L1 bias, tiled
        vecs[2, g * H2:(g + 1) * H2] = ib2.reshape(-1)    # integrand L2 bias, tiled
    vecs[3, :H1] = nb1.reshape(-1)                        # conditioner L1 bias
    vecs[4, :H2] = nb2.reshape(-1)                        # conditioner L2 bias
    vecs[5, :H2] = nw3[:, 0]                              # conditioner out col 0 (offset)
    vecs[6, 0] = ib3.reshape(-1)[0]                       # integrand L3 bias (scalar)
    vecs[6, 1] = nb3.reshape(-1)[0]                       # conditioner out bias col 0

    # --- matrix slab with 8-aligned sections (clean static slices) ------------
    off_nw1 = 0
    off_nw2 = _round_up(D, 8)
    off_iw2bd = off_nw2 + _round_up(H1, 8)
    off_iw3bd = off_iw2bd + LW
    MR = off_iw3bd + LW
    mats = np.zeros((MR, LW), np.float32)
    mats[off_nw1:off_nw1 + D, :H1] = nw1                  # conditioner L1 weight
    mats[off_nw2:off_nw2 + H1, :H2] = nw2                 # conditioner L2 weight
    for g in range(NPACK):                                # block-diagonal lane packing
        mats[off_iw2bd + g * H1: off_iw2bd + (g + 1) * H1,
             g * H2:(g + 1) * H2] = iw2                   # integrand L2 weight (block-diag)
        mats[off_iw3bd + g * H2: off_iw3bd + (g + 1) * H2, g] = iw3[:, 0]  # L3 (block-diag col)

    meta = dict(D=D, H1=H1, H2=H2, LW=LW, NPACK=NPACK, R=R, MR=MR,
                off_nw1=off_nw1, off_nw2=off_nw2,
                off_iw2bd=off_iw2bd, off_iw3bd=off_iw3bd)
    return (jnp.asarray(s_tab), jnp.asarray(w_tab),
            jnp.asarray(vecs), jnp.asarray(mats), meta)


# ----------------------------------------------------------------------------
# Pallas kernel: TB batch rows per grid step, weights & quadrature VMEM-resident.
# ----------------------------------------------------------------------------
def _monotonic_kernel(x_ref, h_ref, s_ref, w_ref, vec_ref, mat_ref, out_ref, *,
                      TB, D, H1, H2, LW, NPACK, R,
                      off_nw1, off_nw2, off_iw2bd, off_iw3bd):
    f32 = jnp.float32
    i = pl.program_id(0)
    row0 = pl.multiple_of(i * TB, TB)              # TB is a multiple of 8
    x_t = x_ref[pl.ds(row0, TB), :]                # [TB, 1]
    h_t = h_ref[pl.ds(row0, TB), :]                # [TB, D]

    # ---- conditioner net: offset = net(h)[:, 0:1] -----------------------------
    # Layer 1 (D tiny): unrolled VPU FMAs instead of a K=D matmul.
    a = jnp.broadcast_to(vec_ref[3:4, 0:H1], (TB, H1))          # nb1
    for d in range(D):
        a = a + h_t[:, d:d + 1] * mat_ref[off_nw1 + d:off_nw1 + d + 1, 0:H1]
    a = jnp.maximum(a, 0.0)                                      # [TB, H1]
    nw2 = mat_ref[off_nw2:off_nw2 + H1, 0:H2]
    a = jnp.maximum(jnp.dot(a, nw2, preferred_element_type=f32)
                    + vec_ref[4:5, 0:H2], 0.0)                   # [TB, H2]
    # Output column 0 only: VPU mul + lane reduce (no 2-lane-wide matmul).
    offset = (jnp.sum(a * vec_ref[5:6, 0:H2], axis=-1, keepdims=True)
              + vec_ref[6:7, 1:2])                               # [TB, 1]

    # ---- integrand at all Clenshaw–Curtis nodes (NPACK-way lane packed) -------
    # Layout: [R (node row, major), TB (batch, sublanes), LW (lane groups x H)].
    s3 = s_ref[...]                                              # [R, 1, LW]
    X = x_t.reshape(1, TB, 1) * s3                               # [R, TB, LW] abscissae
    iw1_t = vec_ref[0:1, :].reshape(1, 1, LW)
    ib1_t = vec_ref[1:2, :].reshape(1, 1, LW)
    z = jnp.maximum(X * iw1_t + ib1_t, 0.0)                      # integrand layer 1
    z = z.reshape(R * TB, LW)                                    # layout-preserving merge
    iw2bd = mat_ref[off_iw2bd:off_iw2bd + LW, :]                 # [LW, LW] block-diag
    z = jnp.maximum(jnp.dot(z, iw2bd, preferred_element_type=f32)
                    + vec_ref[2:3, :], 0.0)                      # layer 2 (full-width MXU)
    iw3bd = mat_ref[off_iw3bd:off_iw3bd + LW, 0:NPACK]           # [LW, NPACK] block-diag
    q = jnp.dot(z, iw3bd, preferred_element_type=f32) + vec_ref[6:7, 0:1]   # [R*TB, NPACK]
    f = jnp.where(q > 0.0, q, jnp.exp(jnp.minimum(q, 0.0)) - 1.0) + (1.0 + 1e-8)  # ELU + 1

    # ---- weighted quadrature sum (padded nodes carry zero weight) -------------
    fw = f.reshape(R, TB, NPACK) * w_ref[...]                    # [R, TB, NPACK]
    z_est = jnp.sum(jnp.sum(fw, axis=0), axis=-1, keepdims=True)  # [TB, 1]
    out_ref[...] = z_est * x_t * 0.5 + offset                    # * (x - x0)/2 + offset


def _choose_tb(B, tb_max=256):
    # Multiple of 8, >=2 grid tiles whenever B allows it (v7x megacore), capped so
    # ~3 live [R*TB, 128] f32 activation buffers stay well inside VMEM on all gens.
    tb = min(_round_up(tb_max, 8), _round_up(max((B + 1) // 2, 1), 8))
    return max(tb, 8)


def monotonic_nn_forward(x, h, s_tab, w_tab, vecs, mats, meta, tb_max=256):
    """Launch the Pallas kernel.  s_tab/w_tab/vecs/mats come from pack_inputs()."""
    B = x.shape[0]
    D, H1, H2 = meta["D"], meta["H1"], meta["H2"]
    LW, NPACK, R, MR = meta["LW"], meta["NPACK"], meta["R"], meta["MR"]

    TB = _choose_tb(B, tb_max)
    G = -(-B // TB)
    B_pad = G * TB
    # Pad the batch; padded rows produce finite garbage and are sliced off below.
    x_p = jnp.zeros((B_pad, 1), jnp.float32).at[:B].set(x.astype(jnp.float32))
    h_p = jnp.zeros((B_pad, D), jnp.float32).at[:B].set(h.astype(jnp.float32))

    kernel = functools.partial(
        _monotonic_kernel, TB=TB, D=D, H1=H1, H2=H2, LW=LW, NPACK=NPACK, R=R,
        off_nw1=meta["off_nw1"], off_nw2=meta["off_nw2"],
        off_iw2bd=meta["off_iw2bd"], off_iw3bd=meta["off_iw3bd"])

    flops = int(B_pad * (R * LW * (2 * LW + 2 * NPACK + 6) + 2 * H1 * (H2 + D)))
    bytes_accessed = int(4 * (x_p.size + h_p.size + B_pad
                              + s_tab.size + w_tab.size + vecs.size + mats.size))
    cost = pl.CostEstimate(flops=flops,
                           transcendentals=int(B_pad * R * NPACK),
                           bytes_accessed=bytes_accessed)

    out = pl.pallas_call(
        kernel,
        out_shape=jax.ShapeDtypeStruct((B_pad, 1), jnp.float32),
        grid=(G,),
        in_specs=[
            pl.BlockSpec((B_pad, 1), lambda i: (0, 0)),        # x: whole, VMEM-resident
            pl.BlockSpec((B_pad, D), lambda i: (0, 0)),        # h: whole, VMEM-resident
            pl.BlockSpec((R, 1, LW), lambda i: (0, 0, 0)),     # quadrature abscissae table
            pl.BlockSpec((R, 1, NPACK), lambda i: (0, 0, 0)),  # quadrature weight table
            pl.BlockSpec((8, LW), lambda i: (0, 0)),           # packed bias/row slab
            pl.BlockSpec((MR, LW), lambda i: (0, 0)),          # packed matrix slab
        ],
        out_specs=pl.BlockSpec((TB, 1), lambda i: (i, 0)),     # one writeback DMA per tile
        compiler_params=pltpu.CompilerParams(
            dimension_semantics=("parallel",)),                # shard tiles across TCs (v7x)
        cost_estimate=cost,
    )(x_p, h_p, s_tab, w_tab, vecs, mats)
    return out[:B]


# ----------------------------------------------------------------------------
# Pure-JAX reference (mirrors the PyTorch code path) for correctness check.
# ----------------------------------------------------------------------------
def reference_forward(x, h, params, nb_steps):
    (iw1, ib1, iw2, ib2, iw3, ib3,
     nw1, nb1, nw2, nb2, nw3, nb3) = params
    cc_w, steps = compute_cc_weights(nb_steps)
    B = x.shape[0]
    Np1 = nb_steps + 1

    a = jax.nn.relu(h @ nw1 + nb1)
    a = jax.nn.relu(a @ nw2 + nb2)
    offset = (a @ nw3 + nb3)[:, 0:1]

    X = x[:, None, :] * (jnp.asarray(steps).reshape(1, Np1, 1) + 1.0) / 2.0  # [B, Np1, 1]
    Xf = X.reshape(-1, 1)
    inp = jnp.concatenate([Xf, jnp.zeros_like(Xf)], axis=1)                  # cat((x, h=0), 1)
    z = jax.nn.relu(inp @ iw1 + ib1)
    z = jax.nn.relu(z @ iw2 + ib2)
    z = z @ iw3 + ib3
    f = jnp.where(z > 0.0, z, jnp.exp(jnp.minimum(z, 0.0)) - 1.0) + (1.0 + 1e-8)
    f = f.reshape(B, Np1)
    z_est = (f * jnp.asarray(cc_w).reshape(1, Np1)).sum(axis=1, keepdims=True)
    integrated = z_est * x / 2.0
    return integrated + offset


# ----------------------------------------------------------------------------
# Deterministic parameter init (mimics nn.Linear default init; synthetic).
# ----------------------------------------------------------------------------
def linear_init(key, fan_in, fan_out):
    kw, kb = jax.random.split(key)
    bound = 1.0 / np.sqrt(fan_in)
    W = jax.random.uniform(kw, (fan_in, fan_out), jnp.float32, -bound, bound)
    b = jax.random.uniform(kb, (1, fan_out), jnp.float32, -bound, bound)
    return W, b


if __name__ == "__main__":
    B = 40           # batch (not a multiple of the tile -> exercises padding, 2 grid tiles)
    in_d = 4         # -> conditioner input dim = in_d - 1 = 3
    D = in_d - 1
    H1, H2 = 32, 32  # hidden_layers = [32, 32]
    nb_steps = 50    # module default

    key = jax.random.PRNGKey(0)
    keys = jax.random.split(key, 8)

    # IntegrandNN(2, [H1, H2]): Linear(2,H1), Linear(H1,H2), Linear(H2,1)
    iw1, ib1 = linear_init(keys[0], 2, H1)
    iw2, ib2 = linear_init(keys[1], H1, H2)
    iw3, ib3 = linear_init(keys[2], H2, 1)
    # conditioner net: Linear(D,H1), Linear(H1,H2), Linear(H2,2)
    nw1, nb1 = linear_init(keys[3], D, H1)
    nw2, nb2 = linear_init(keys[4], H1, H2)
    nw3, nb3 = linear_init(keys[5], H2, 2)
    params = (iw1, ib1, iw2, ib2, iw3, ib3, nw1, nb1, nw2, nb2, nw3, nb3)

    x = jax.random.normal(keys[6], (B, 1), jnp.float32)
    h = jax.random.normal(keys[7], (B, D), jnp.float32)

    # One-time packing of weights + quadrature tables into lane-dense operands.
    packed = pack_inputs(params, nb_steps)

    out = jax.block_until_ready(monotonic_nn_forward(x, h, *packed))
    ref = jax.block_until_ready(reference_forward(x, h, params, nb_steps))
    assert out.shape == (B, 1)
    np.testing.assert_allclose(np.asarray(out), np.asarray(ref), rtol=2e-5, atol=2e-5)

    print("KERNEL_OK")
</pallas_src>

<mosaic_0001>
module attributes {stable_mosaic.version = 11 : i64} {
  func.func @_monotonic_kernel(%arg0: i32, %arg1: memref<48x1xf32, #tpu.memory_space<vmem>>, %arg2: memref<48x3xf32, #tpu.memory_space<vmem>>, %arg3: memref<16x1x128xf32, #tpu.memory_space<vmem>>, %arg4: memref<16x1x4xf32, #tpu.memory_space<vmem>>, %arg5: memref<8x128xf32, #tpu.memory_space<vmem>>, %arg6: memref<296x128xf32, #tpu.memory_space<vmem>>, %arg7: memref<24x1xf32, #tpu.memory_space<vmem>>) attributes {dimension_semantics = [#tpu.dimension_semantics<parallel>], iteration_bounds = array<i64: 2>, scalar_prefetch = 0 : i64, scratch_operands = 0 : i64, tpu.core_type = #tpu.core_type<tc>, window_params = [{pipeline_mode = #tpu.pipeline_mode<synchronous>, transform_indices = @transform_0, window_bounds = array<i64: 48, 1>}, {pipeline_mode = #tpu.pipeline_mode<synchronous>, transform_indices = @transform_1, window_bounds = array<i64: 48, 3>}, {pipeline_mode = #tpu.pipeline_mode<synchronous>, transform_indices = @transform_2, window_bounds = array<i64: 16, 1, 128>}, {pipeline_mode = #tpu.pipeline_mode<synchronous>, transform_indices = @transform_3, window_bounds = array<i64: 16, 1, 4>}, {pipeline_mode = #tpu.pipeline_mode<synchronous>, transform_indices = @transform_4, window_bounds = array<i64: 8, 128>}, {pipeline_mode = #tpu.pipeline_mode<synchronous>, transform_indices = @transform_5, window_bounds = array<i64: 296, 128>}, {transform_indices = @transform_6, window_bounds = array<i64: 24, 1>}]} {
    %c24_i32 = arith.constant 24 : i32
    %0 = arith.muli %arg0, %c24_i32 : i32
    %1 = tpu.assume_multiple %0, 24 : i32
    %2 = arith.index_cast %1 : i32 to index
    %c0 = arith.constant 0 : index
    %3 = vector.load %arg1[%2, %c0] : memref<48x1xf32, #tpu.memory_space<vmem>>, vector<24x1xf32>
    %4 = arith.index_cast %1 : i32 to index
    %c0_0 = arith.constant 0 : index
    %5 = vector.load %arg2[%4, %c0_0] : memref<48x3xf32, #tpu.memory_space<vmem>>, vector<24x3xf32>
    %c3 = arith.constant 3 : index
    %c0_1 = arith.constant 0 : index
    %6 = vector.load %arg5[%c3, %c0_1] : memref<8x128xf32, #tpu.memory_space<vmem>>, vector<1x32xf32>
    %7 = vector.shape_cast %6 : vector<1x32xf32> to vector<1x32xf32>
    %8 = vector.broadcast %7 : vector<1x32xf32> to vector<24x32xf32>
    %9 = vector.extract_strided_slice %5 {offsets = [0, 0], sizes = [24, 1], strides = [1, 1]} : vector<24x3xf32> to vector<24x1xf32>
    %c0_2 = arith.constant 0 : index
    %c0_3 = arith.constant 0 : index
    %10 = vector.load %arg6[%c0_2, %c0_3] : memref<296x128xf32, #tpu.memory_space<vmem>>, vector<1x32xf32>
    %11 = vector.broadcast %9 : vector<24x1xf32> to vector<24x32xf32>
    %12 = vector.broadcast %10 : vector<1x32xf32> to vector<24x32xf32>
    %13 = arith.mulf %11, %12 : vector<24x32xf32>
    %14 = arith.addf %8, %13 : vector<24x32xf32>
    %15 = vector.extract_strided_slice %5 {offsets = [0, 1], sizes = [24, 1], strides = [1, 1]} : vector<24x3xf32> to vector<24x1xf32>
    %c1 = arith.constant 1 : index
    %c0_4 = arith.constant 0 : index
    %16 = vector.load %arg6[%c1, %c0_4] : memref<296x128xf32, #tpu.memory_space<vmem>>, vector<1x32xf32>
    %17 = vector.broadcast %15 : vector<24x1xf32> to vector<24x32xf32>
    %18 = vector.broadcast %16 : vector<1x32xf32> to vector<24x32xf32>
    %19 = arith.mulf %17, %18 : vector<24x32xf32>
    %20 = arith.addf %14, %19 : vector<24x32xf32>
    %21 = vector.extract_strided_slice %5 {offsets = [0, 2], sizes = [24, 1], strides = [1, 1]} : vector<24x3xf32> to vector<24x1xf32>
    %c2 = arith.constant 2 : index
    %c0_5 = arith.constant 0 : index
    %22 = vector.load %arg6[%c2, %c0_5] : memref<296x128xf32, #tpu.memory_space<vmem>>, vector<1x32xf32>
    %23 = vector.broadcast %21 : vector<24x1xf32> to vector<24x32xf32>
    %24 = vector.broadcast %22 : vector<1x32xf32> to vector<24x32xf32>
    %25 = arith.mulf %23, %24 : vector<24x32xf32>
    %26 = arith.addf %20, %25 : vector<24x32xf32>
    %cst = arith.constant 0.000000e+00 : f32
    %27 = vector.broadcast %cst : f32 to vector<24x32xf32>
    %28 = arith.maximumf %26, %27 : vector<24x32xf32>
    %c8 = arith.constant 8 : index
    %c0_6 = arith.constant 0 : index
    %29 = vector.load %arg6[%c8, %c0_6] : memref<296x128xf32, #tpu.memory_space<vmem>>, vector<32x32xf32>
    %cst_7 = arith.constant dense<0.000000e+00> : vector<24x32xf32>
    %30 = tpu.matmul %28, %29, %cst_7 {dimension_numbers = #tpu.dot_dimension_numbers<[1], [0], [0], [1], [0, 0, 1, 1], [], []>} : vector<24x32xf32>, vector<32x32xf32>, vector<24x32xf32> -> vector<24x32xf32>
    %c4 = arith.constant 4 : index
    %c0_8 = arith.constant 0 : index
    %31 = vector.load %arg5[%c4, %c0_8] : memref<8x128xf32, #tpu.memory_space<vmem>>, vector<1x32xf32>
    %32 = vector.broadcast %31 : vector<1x32xf32> to vector<24x32xf32>
    %33 = arith.addf %30, %32 : vector<24x32xf32>
    %cst_9 = arith.constant 0.000000e+00 : f32
    %34 = vector.broadcast %cst_9 : f32 to vector<24x32xf32>
    %35 = arith.maximumf %33, %34 : vector<24x32xf32>
    %c5 = arith.constant 5 : index
    %c0_10 = arith.constant 0 : index
    %36 = vector.load %arg5[%c5, %c0_10] : memref<8x128xf32, #tpu.memory_space<vmem>>, vector<1x32xf32>
    %37 = vector.broadcast %36 : vector<1x32xf32> to vector<24x32xf32>
    %38 = arith.mulf %35, %37 : vector<24x32xf32>
    %cst_11 = arith.constant dense<0.000000e+00> : vector<24xf32>
    %39 = vector.multi_reduction <add>, %38, %cst_11 [1] : vector<24x32xf32> to vector<24xf32>
    %40 = vector.shape_cast %39 : vector<24xf32> to vector<24x1xf32>
    %c6 = arith.constant 6 : index
    %c1_12 = arith.constant 1 : index
    %41 = vector.load %arg5[%c6, %c1_12] : memref<8x128xf32, #tpu.memory_space<vmem>>, vector<1x1xf32>
    %42 = vector.broadcast %41 : vector<1x1xf32> to vector<24x1xf32>
    %43 = arith.addf %40, %42 : vector<24x1xf32>
    %c0_13 = arith.constant 0 : index
    %c0_14 = arith.constant 0 : index
    %c0_15 = arith.constant 0 : index
    %44 = vector.load %arg3[%c0_13, %c0_14, %c0_15] : memref<16x1x128xf32, #tpu.memory_space<vmem>>, vector<16x1x128xf32>
    %45 = vector.shape_cast %3 : vector<24x1xf32> to vector<1x24x1xf32>
    %46 = vector.broadcast %45 : vector<1x24x1xf32> to vector<16x24x128xf32>
    %47 = vector.broadcast %44 : vector<16x1x128xf32> to vector<16x24x128xf32>
    %48 = arith.mulf %46, %47 : vector<16x24x128xf32>
    %c0_16 = arith.constant 0 : index
    %c0_17 = arith.constant 0 : index
    %49 = vector.load %arg5[%c0_16, %c0_17] : memref<8x128xf32, #tpu.memory_space<vmem>>, vector<1x128xf32>
    %50 = vector.shape_cast %49 : vector<1x128xf32> to vector<1x1x128xf32>
    %c1_18 = arith.constant 1 : index
    %c0_19 = arith.constant 0 : index
    %51 = vector.load %arg5[%c1_18, %c0_19] : memref<8x128xf32, #tpu.memory_space<vmem>>, vector<1x128xf32>
    %52 = vector.shape_cast %51 : vector<1x128xf32> to vector<1x1x128xf32>
    %53 = vector.broadcast %50 : vector<1x1x128xf32> to vector<16x24x128xf32>
    %54 = arith.mulf %48, %53 : vector<16x24x128xf32>
    %55 = vector.broadcast %52 : vector<1x1x128xf32> to vector<16x24x128xf32>
    %56 = arith.addf %54, %55 : vector<16x24x128xf32>
    %cst_20 = arith.constant 0.000000e+00 : f32
    %57 = vector.broadcast %cst_20 : f32 to vector<16x24x128xf32>
    %58 = arith.maximumf %56, %57 : vector<16x24x128xf32>
    %59 = vector.shape_cast %58 : vector<16x24x128xf32> to vector<384x128xf32>
    %c40 = arith.constant 40 : index
    %c0_21 = arith.constant 0 : index
    %60 = vector.load %arg6[%c40, %c0_21] : memref<296x128xf32, #tpu.memory_space<vmem>>, vector<128x128xf32>
    %cst_22 = arith.constant dense<0.000000e+00> : vector<384x128xf32>
    %61 = tpu.matmul %59, %60, %cst_22 {dimension_numbers = #tpu.dot_dimension_numbers<[1], [0], [0], [1], [0, 0, 1, 1], [], []>} : vector<384x128xf32>, vector<128x128xf32>, vector<384x128xf32> -> vector<384x128xf32>
    %c2_23 = arith.constant 2 : index
    %c0_24 = arith.constant 0 : index
    %62 = vector.load %arg5[%c2_23, %c0_24] : memref<8x128xf32, #tpu.memory_space<vmem>>, vector<1x128xf32>
    %63 = vector.broadcast %62 : vector<1x128xf32> to vector<384x128xf32>
    %64 = arith.addf %61, %63 : vector<384x128xf32>
    %cst_25 = arith.constant 0.000000e+00 : f32
    %65 = vector.broadcast %cst_25 : f32 to vector<384x128xf32>
    %66 = arith.maximumf %64, %65 : vector<384x128xf32>
    %c168 = arith.constant 168 : index
    %c0_26 = arith.constant 0 : index
    %67 = vector.load %arg6[%c168, %c0_26] : memref<296x128xf32, #tpu.memory_space<vmem>>, vector<128x4xf32>
    %cst_27 = arith.constant dense<0.000000e+00> : vector<384x4xf32>
    %68 = tpu.matmul %66, %67, %cst_27 {dimension_numbers = #tpu.dot_dimension_numbers<[1], [0], [0], [1], [0, 0, 1, 1], [], []>} : vector<384x128xf32>, vector<128x4xf32>, vector<384x4xf32> -> vector<384x4xf32>
    %c6_28 = arith.constant 6 : index
    %c0_29 = arith.constant 0 : index
    %69 = vector.load %arg5[%c6_28, %c0_29] : memref<8x128xf32, #tpu.memory_space<vmem>>, vector<1x1xf32>
    %70 = vector.broadcast %69 : vector<1x1xf32> to vector<384x4xf32>
    %71 = arith.addf %68, %70 : vector<384x4xf32>
    %cst_30 = arith.constant 0.000000e+00 : f32
    %72 = vector.broadcast %cst_30 : f32 to vector<384x4xf32>
    %73 = arith.cmpf ogt, %71, %72 : vector<384x4xf32>
    %cst_31 = arith.constant 0.000000e+00 : f32
    %74 = vector.broadcast %cst_31 : f32 to vector<384x4xf32>
    %75 = arith.minimumf %71, %74 : vector<384x4xf32>
    %76 = math.exp %75 : vector<384x4xf32>
    %cst_32 = arith.constant 1.000000e+00 : f32
    %77 = vector.broadcast %cst_32 : f32 to vector<384x4xf32>
    %78 = arith.subf %76, %77 : vector<384x4xf32>
    %79 = arith.select %73, %71, %78 : vector<384x4xi1>, vector<384x4xf32>
    %cst_33 = arith.constant 1.000000e+00 : f32
    %80 = vector.broadcast %cst_33 : f32 to vector<384x4xf32>
    %81 = arith.addf %79, %80 : vector<384x4xf32>
    %82 = vector.shape_cast %81 : vector<384x4xf32> to vector<16x24x4xf32>
    %c0_34 = arith.constant 0 : index
    %c0_35 = arith.constant 0 : index
    %c0_36 = arith.constant 0 : index
    %83 = vector.load %arg4[%c0_34, %c0_35, %c0_36] : memref<16x1x4xf32, #tpu.memory_space<vmem>>, vector<16x1x4xf32>
    %84 = vector.broadcast %83 : vector<16x1x4xf32> to vector<16x24x4xf32>
    %85 = arith.mulf %82, %84 : vector<16x24x4xf32>
    %cst_37 = arith.constant dense<0.000000e+00> : vector<24x4xf32>
    %86 = vector.multi_reduction <add>, %85, %cst_37 [0] : vector<16x24x4xf32> to vector<24x4xf32>
    %cst_38 = arith.constant dense<0.000000e+00> : vector<24xf32>
    %87 = vector.multi_reduction <add>, %86, %cst_38 [1] : vector<24x4xf32> to vector<24xf32>
    %88 = vector.shape_cast %87 : vector<24xf32> to vector<24x1xf32>
    %89 = arith.mulf %88, %3 : vector<24x1xf32>
    %cst_39 = arith.constant 5.000000e-01 : f32
    %90 = vector.broadcast %cst_39 : f32 to vector<24x1xf32>
    %91 = arith.mulf %89, %90 : vector<24x1xf32>
    %92 = arith.addf %91, %43 : vector<24x1xf32>
    %c0_40 = arith.constant 0 : index
    %c0_41 = arith.constant 0 : index
    %93 = vector.load %arg7[%c0_40, %c0_41] : memref<24x1xf32, #tpu.memory_space<vmem>>, vector<24x1xf32>
    tpu.vector_store %arg7[%c0_40, %c0_41], %92 {strides = array<i32>} : memref<24x1xf32, #tpu.memory_space<vmem>>, vector<24x1xf32>,
    return
  }
  func.func @transform_0(%arg0: i32) -> (i32, i32) {
    %c0_i32 = arith.constant 0 : i32
    %c0_i32_0 = arith.constant 0 : i32
    %c0_i32_1 = arith.constant 0 : i32
    return %c0_i32, %c0_i32_0 : i32, i32
  }
  func.func @transform_1(%arg0: i32) -> (i32, i32) {
    %c0_i32 = arith.constant 0 : i32
    %c0_i32_0 = arith.constant 0 : i32
    %c0_i32_1 = arith.constant 0 : i32
    return %c0_i32, %c0_i32_0 : i32, i32
  }
  func.func @transform_2(%arg0: i32) -> (i32, i32, i32) {
    %c0_i32 = arith.constant 0 : i32
    %c0_i32_0 = arith.constant 0 : i32
    %c0_i32_1 = arith.constant 0 : i32
    %c0_i32_2 = arith.constant 0 : i32
    return %c0_i32, %c0_i32_0, %c0_i32_1 : i32, i32, i32
  }
  func.func @transform_3(%arg0: i32) -> (i32, i32, i32) {
    %c0_i32 = arith.constant 0 : i32
    %c0_i32_0 = arith.constant 0 : i32
    %c0_i32_1 = arith.constant 0 : i32
    %c0_i32_2 = arith.constant 0 : i32
    return %c0_i32, %c0_i32_0, %c0_i32_1 : i32, i32, i32
  }
  func.func @transform_4(%arg0: i32) -> (i32, i32) {
    %c0_i32 = arith.constant 0 : i32
    %c0_i32_0 = arith.constant 0 : i32
    %c0_i32_1 = arith.constant 0 : i32
    return %c0_i32, %c0_i32_0 : i32, i32
  }
  func.func @transform_5(%arg0: i32) -> (i32, i32) {
    %c0_i32 = arith.constant 0 : i32
    %c0_i32_0 = arith.constant 0 : i32
    %c0_i32_1 = arith.constant 0 : i32
    return %c0_i32, %c0_i32_0 : i32, i32
  }
  func.func @transform_6(%arg0: i32) -> (i32, i32) {
    %c0_i32 = arith.constant 0 : i32
    %c0_i32_0 = arith.constant 0 : i32
    return %arg0, %c0_i32 : i32, i32
  }
}

</mosaic_0001>

<llo_original>
// kernel: tpu_custom_call.1
$region0: #{tpu_custom_call.1}
  #allocation0 [shape = 'u32[]', space=smem, size = 0x4, offset = 0x4, fixed_abs, tag = 'smem constant byte address 0x4 - core index']
  #allocation1 [shape = 'u32[144,128]{1,0:T(1,128)}', space=vmem, size = 0x12000, scoped, tag = 'internal scratch']
  %s0 = inlined_call_operand.vmem [shape: f32[48,1], index: 0, kind: input, shape index: {}]
  %s1 = inlined_call_operand.vmem [shape: f32[48,3], index: 1, kind: input, shape index: {}]
  %s2 = inlined_call_operand.vmem [shape: f32[16,1,128], index: 2, kind: input, shape index: {}]
  %s3 = inlined_call_operand.vmem [shape: f32[16,1,4], index: 3, kind: input, shape index: {}]
  %s4 = inlined_call_operand.vmem [shape: f32[8,128], index: 4, kind: input, shape index: {}]
  %s5 = inlined_call_operand.hbm [shape: f32[296,128], index: 5, kind: input, shape index: {}]
  %s6 = inlined_call_operand.vmem [shape: f32[48,1], index: 6, kind: output, shape index: {}]
  %s7 = sld [smem:[#allocation0]]
  $region61: #{tpu_custom_call.1} parent=0
    _
  %s9 = ssub.s32 1, %s7
  %s10 = scalar_select 0, %s9, %s7
  $region1: #{tpu_custom_call.1} parent=0
    #allocation2 [shape = 'u8[151552]{0}', space=vmem, size = 0x25000, scoped, tag = 'input window, operand 5, single buffered']
    #allocation3 [shape = 's32[2]{0}', space=sflag, size = 0x8, scoped, tag = 'scoped memory for tpu_custom_call.1']
    %11 = vsyncpa [#allocation3], 0
    loop: start=0, step=1, limit=4
    $region2: #{tpu_custom_call.1} parent=1 // loop_pre_header
      _
    $region3: #{tpu_custom_call.1} parent=1 // loop_header
      %s13 = sphi 0, %s17
      %p14 = scmp.ge.s32.totalorder %s13, 4
      %s21 = sphi 0, %s21
      %s23 = sphi 0, %s21
      %s24 = sphi 0, %s23
      %s38 = sphi 0, %s24
      %s42 = sphi 0, %s42
      %s44 = sphi 0, %s42
      %s45 = sphi 0, %s44
      %s59 = sphi 0, %s45
      %s63 = sphi 0, %s63
      %s65 = sphi 0, %s63
      %s66 = sphi 0, %s65
      %s80 = sphi 0, %s66
      %s84 = sphi 0, %s84
      %s86 = sphi 0, %s84
      %s87 = sphi 0, %s86
      %s101 = sphi 0, %s87
      %s105 = sphi 0, %s105
      %s107 = sphi 0, %s105
      %s108 = sphi 0, %s107
      %s122 = sphi 0, %s108
      %s126 = sphi 0, %s126
      %s128 = sphi 0, %s126
      %s129 = sphi 0, %s128
      %s143 = sphi 0, %s129
      %s149 = sphi 0, %s151
      %s152 = sphi 0, %s149
      %s153 = sphi 0, %s152
      %s169 = sphi 0, %s153
    $region4: #{tpu_custom_call.1} parent=1 // loop_header_branch
      %16 = sbr.rel (%p14) target = $region8
    $region5: #{tpu_custom_call.1} parent=1 // loop_body
      %s18 = ssub.s32 %s13, 1
      %s19 = ssub.s32 %s13, 2
      %s20 = sadd.s32 %s13, 1
      %s22 = sadd.s32 %s21, 1
      %p25 = scmp.eq.s32.totalorder %s13, 1
      %p26 = scmp.ne.s32.totalorder %s21, %s23
      %p27 = scmp.eq.s32.totalorder %s13, 0
      %p28 = por %p26, %p27
      %p29 = scmp.ne.s32.totalorder %s21, %s23
      %p30 = scmp.eq.s32.totalorder %s18, 1
      %p31 = por %p29, %p30
      %p32 = scmp.ne.s32.totalorder %s23, %s24
      %p33 = scmp.eq.s32.totalorder %s18, 0
      %p34 = por %p32, %p33
      %p35 = scmp.ne.s32.totalorder %s23, %s24
      %p36 = scmp.eq.s32.totalorder %s19, 1
      %p37 = por %p35, %p36
      %p39 = scmp.ne.s32.totalorder %s24, %s38
      %p40 = scmp.eq.s32.totalorder %s19, 0
      %p41 = por %p39, %p40
      %s43 = sadd.s32 %s42, 1
      %p46 = scmp.eq.s32.totalorder %s13, 1
      %p47 = scmp.ne.s32.totalorder %s42, %s44
      %p48 = scmp.eq.s32.totalorder %s13, 0
      %p49 = por %p47, %p48
      %p50 = scmp.ne.s32.totalorder %s42, %s44
      %p51 = scmp.eq.s32.totalorder %s18, 1
      %p52 = por %p50, %p51
      %p53 = scmp.ne.s32.totalorder %s44, %s45
      %p54 = scmp.eq.s32.totalorder %s18, 0
      %p55 = por %p53, %p54
      %p56 = scmp.ne.s32.totalorder %s44, %s45
      %p57 = scmp.eq.s32.totalorder %s19, 1
      %p58 = por %p56, %p57
      %p60 = scmp.ne.s32.totalorder %s45, %s59
      %p61 = scmp.eq.s32.totalorder %s19, 0
      %p62 = por %p60, %p61
      %s64 = sadd.s32 %s63, 1
      %p67 = scmp.eq.s32.totalorder %s13, 1
      %p68 = scmp.ne.s32.totalorder %s63, %s65
      %p69 = scmp.eq.s32.totalorder %s13, 0
      %p70 = por %p68, %p69
      %p71 = scmp.ne.s32.totalorder %s63, %s65
      %p72 = scmp.eq.s32.totalorder %s18, 1
      %p73 = por %p71, %p72
      %p74 = scmp.ne.s32.totalorder %s65, %s66
      %p75 = scmp.eq.s32.totalorder %s18, 0
      %p76 = por %p74, %p75
      %p77 = scmp.ne.s32.totalorder %s65, %s66
      %p78 = scmp.eq.s32.totalorder %s19, 1
      %p79 = por %p77, %p78
      %p81 = scmp.ne.s32.totalorder %s66, %s80
      %p82 = scmp.eq.s32.totalorder %s19, 0
      %p83 = por %p81, %p82
      %s85 = sadd.s32 %s84, 1
      %p88 = scmp.eq.s32.totalorder %s13, 1
      %p89 = scmp.ne.s32.totalorder %s84, %s86
      %p90 = scmp.eq.s32.totalorder %s13, 0
      %p91 = por %p89, %p90
      %p92 = scmp.ne.s32.totalorder %s84, %s86
      %p93 = scmp.eq.s32.totalorder %s18, 1
      %p94 = por %p92, %p93
      %p95 = scmp.ne.s32.totalorder %s86, %s87
      %p96 = scmp.eq.s32.totalorder %s18, 0
      %p97 = por %p95, %p96
      %p98 = scmp.ne.s32.totalorder %s86, %s87
      %p99 = scmp.eq.s32.totalorder %s19, 1
      %p100 = por %p98, %p99
      %p102 = scmp.ne.s32.totalorder %s87, %s101
      %p103 = scmp.eq.s32.totalorder %s19, 0
      %p104 = por %p102, %p103
      %s106 = sadd.s32 %s105, 1
      %p109 = scmp.eq.s32.totalorder %s13, 1
      %p110 = scmp.ne.s32.totalorder %s105, %s107
      %p111 = scmp.eq.s32.totalorder %s13, 0
      %p112 = por %p110, %p111
      %p113 = scmp.ne.s32.totalorder %s105, %s107
      %p114 = scmp.eq.s32.totalorder %s18, 1
      %p115 = por %p113, %p114
      %p116 = scmp.ne.s32.totalorder %s107, %s108
      %p117 = scmp.eq.s32.totalorder %s18, 0
      %p118 = por %p116, %p117
      %p119 = scmp.ne.s32.totalorder %s107, %s108
      %p120 = scmp.eq.s32.totalorder %s19, 1
      %p121 = por %p119, %p120
      %p123 = scmp.ne.s32.totalorder %s108, %s122
      %p124 = scmp.eq.s32.totalorder %s19, 0
      %p125 = por %p123, %p124
      %s127 = sadd.s32 %s126, 1
      %p130 = scmp.eq.s32.totalorder %s13, 1
      %p131 = scmp.ne.s32.totalorder %s126, %s128
      %p132 = scmp.eq.s32.totalorder %s13, 0
      %p133 = por %p131, %p132
      %p134 = scmp.ne.s32.totalorder %s126, %s128
      %p135 = scmp.eq.s32.totalorder %s18, 1
      %p136 = por %p134, %p135
      %p137 = scmp.ne.s32.totalorder %s128, %s129
      %p138 = scmp.eq.s32.totalorder %s18, 0
      %p139 = por %p137, %p138
      %p140 = scmp.ne.s32.totalorder %s128, %s129
      %p141 = scmp.eq.s32.totalorder %s19, 1
      %p142 = por %p140, %p141
      %p144 = scmp.ne.s32.totalorder %s129, %s143
      %p145 = scmp.eq.s32.totalorder %s19, 0
      %p146 = por %p144, %p145
      %s147 = ssub.s32 %s13, %s20
      %p148 = scmp.eq.s32.totalorder %s147, 0
      %s150 = sadd.s32 %s149, 1
      %s151 = scalar_select %p148, %s149, %s150
      %p154 = pneg %p148
      %p155 = scmp.eq.s32.totalorder %s13, 1
      %p156 = por %p154, %p155
      %p157 = scmp.ne.s32.totalorder %s149, %s152
      %p158 = scmp.eq.s32.totalorder %s13, 0
      %p159 = por %p157, %p158
      %p160 = scmp.ne.s32.totalorder %s149, %s152
      %p161 = scmp.eq.s32.totalorder %s18, 1
      %p162 = por %p160, %p161
      %p163 = scmp.ne.s32.totalorder %s152, %s153
      %p164 = scmp.eq.s32.totalorder %s18, 0
      %p165 = por %p163, %p164
      %p166 = scmp.ne.s32.totalorder %s152, %s153
      %p167 = scmp.eq.s32.totalorder %s19, 1
      %p168 = por %p166, %p167
      %p170 = scmp.ne.s32.totalorder %s153, %s169
      %p171 = scmp.eq.s32.totalorder %s19, 0
      %p172 = por %p170, %p171
      %p173 = scmp.le.s32.totalorder 1, %s13
      %p174 = scmp.lt.s32.totalorder %s13, 3
      %p175 = pnand %p173, %p174
      %p176 = pneg %p175
      // Predicated region
      $region9: #{tpu_custom_call.1} parent=5 // pred_check
        _
      $region10: #{tpu_custom_call.1} parent=5 // pred_check_branch
        %178 = sbr.rel (%p175) target = $region12
      $region11: #{tpu_custom_call.1} parent=5 // pred_region
        %s179 = ssub.s32 %s13, 1
        // Predicated region
        $region13: #{tpu_custom_call.1} parent=11 // pred_check
          %p180 = pneg %p34
        $region14: #{tpu_custom_call.1} parent=11 // pred_check_branch
          %182 = sbr.rel (%p180) target = $region16
        $region15: #{tpu_custom_call.1} parent=11 // pred_region
          _
        $region16: #{tpu_custom_call.1} parent=11 // pred_fallthru
          _
        // Predicated region
        $region17: #{tpu_custom_call.1} parent=11 // pred_check
          %p183 = pneg %p55
        $region18: #{tpu_custom_call.1} parent=11 // pred_check_branch
          %185 = sbr.rel (%p183) target = $region20
        $region19: #{tpu_custom_call.1} parent=11 // pred_region
          _
        $region20: #{tpu_custom_call.1} parent=11 // pred_fallthru
          _
        // Predicated region
        $region21: #{tpu_custom_call.1} parent=11 // pred_check
          %p186 = pneg %p76
        $region22: #{tpu_custom_call.1} parent=11 // pred_check_branch
          %188 = sbr.rel (%p186) target = $region24
        $region23: #{tpu_custom_call.1} parent=11 // pred_region
          _
        $region24: #{tpu_custom_call.1} parent=11 // pred_fallthru
          _
        // Predicated region
        $region25: #{tpu_custom_call.1} parent=11 // pred_check
          %p189 = pneg %p97
        $region26: #{tpu_custom_call.1} parent=11 // pred_check_branch
          %191 = sbr.rel (%p189) target = $region28
        $region27: #{tpu_custom_call.1} parent=11 // pred_region
          _
        $region28: #{tpu_custom_call.1} parent=11 // pred_fallthru
          _
        // Predicated region
        $region29: #{tpu_custom_call.1} parent=11 // pred_check
          %p192 = pneg %p118
        $region30: #{tpu_custom_call.1} parent=11 // pred_check_branch
          %194 = sbr.rel (%p192) target = $region32
        $region31: #{tpu_custom_call.1} parent=11 // pred_region
          _
        $region32: #{tpu_custom_call.1} parent=11 // pred_fallthru
          _
        // Predicated region
        $region33: #{tpu_custom_call.1} parent=11 // pred_check
          %p195 = pneg %p139
        $region34: #{tpu_custom_call.1} parent=11 // pred_check_branch
          %197 = sbr.rel (%p195) target = $region36
        $region35: #{tpu_custom_call.1} parent=11 // pred_region
          %s199 = ssub.s32 4736, 4736
          %200 = vsyncadd [#allocation3], %s199
          %s201 = sshll.u32 [#allocation2], 4
          %s202 = int_to_ptr.vmem [resolvable:$true] %s201
          %207 = dma.hbm_to_vmem [thread:$0]  %s5, 4736, %s202, [#allocation3], 128, 128, 8
        $region36: #{tpu_custom_call.1} parent=11 // pred_fallthru
          _
      $region12: #{tpu_custom_call.1} parent=5 // pred_fallthru
        _
      %p208 = scmp.lt.s32.totalorder %s13, 2
      // Predicated region
      $region37: #{tpu_custom_call.1} parent=5 // pred_check
        %p209 = pneg %p208
      $region38: #{tpu_custom_call.1} parent=5 // pred_check_branch
        %211 = sbr.rel (%p209) target = $region40
      $region39: #{tpu_custom_call.1} parent=5 // pred_region
        _
      $region40: #{tpu_custom_call.1} parent=5 // pred_fallthru
        _
      %p212 = scmp.le.s32.totalorder 1, %s13
      %p213 = scmp.lt.s32.totalorder %s13, 3
      %p214 = pnand %p212, %p213
      %p215 = pneg %p214
      // Predicated region
      $region41: #{tpu_custom_call.1} parent=5 // pred_check
        _
      $region42: #{tpu_custom_call.1} parent=5 // pred_check_branch
        %217 = sbr.rel (%p214) target = $region44
      $region43: #{tpu_custom_call.1} parent=5 // pred_region
        %s218 = ssub.s32 %s13, 1
        // Predicated region
        $region45: #{tpu_custom_call.1} parent=43 // pred_check
          %p219 = pneg %p139
        $region46: #{tpu_custom_call.1} parent=43 // pred_check_branch
          %221 = sbr.rel (%p219) target = $region48
        $region47: #{tpu_custom_call.1} parent=43 // pred_region
          %222 = dma.done [#allocation3], 4736
        $region48: #{tpu_custom_call.1} parent=43 // pred_fallthru
          _
        %p223 = pneg %p34
        %p224 = pneg %p31
        %p225 = pneg %p55
        %p226 = pneg %p52
        %p227 = pneg %p76
        %p228 = pneg %p73
        %p229 = pneg %p97
        %p230 = pneg %p94
        %p231 = pneg %p118
        %p232 = pneg %p115
        %p233 = pneg %p139
        %p234 = pneg %p136
        %p235 = pneg %p165
        %p236 = pneg %p162
        %s237 = smul.u32 3, %s18
        %p238 = scmp.lt.s32.totalorder %s237, 5
        %s239 = scalar_select %p238, %s237, 5
        %s240 = smul.addr %s239, 8
        %s241 = scalar_lea.vmem %s6, %s240
        %s242 = smul.u32 3, %s18
        %p243 = scmp.lt.s32.totalorder %s242, 5
        %s244 = scalar_select %p243, %s242, 5
        %s245 = smul.addr %s244, 8
        %s246 = scalar_lea.vmem %s6, %s245
        %s247 = smul.u32 3, %s18
        %s248 = smul.u32 %s18, 24
        %s249 = scalar_lea.vmem %s0, %s248
        %v250 = vld [vmem:[%s249] sm:$0xff]
        %v251 = vld [vmem:[%s249 + $0x8] sm:$0xff]
        %v252 = vld [vmem:[%s249 + $0x10] sm:$0xff]
        %s253 = scalar_lea.vmem %s1, %s248
        %v254 = vld [vmem:[%s253] sm:$0xff]
        %v255 = vld [vmem:[%s253 + $0x8] sm:$0xff]
        %v256 = vld [vmem:[%s253 + $0x10] sm:$0xff]
        %v257 = vld [vmem:[%s4 + $0x3] sm:$0x1]
        %v258 = vlaneseq
        %v259 = vshrl.u32 %v258, 7
        %v260 = vsub.s32 0, %v259
        %v261 = vrot.slane %v257, %v260
        %v262 = vld [vmem:[#allocation2] sm:$0x1]
        %264 = vset.pattern.permute.xlu0 0
        %265 = vperm.xlu0 %264, %v254
        %v266 = vpop.permute.xlu0 %265
        %269 = vset.pattern.permute.xlu0 0
        %270 = vperm.xlu0 %269, %v255
        %v271 = vpop.permute.xlu0 %270
        %274 = vset.pattern.permute.xlu0 0
        %275 = vperm.xlu0 %274, %v256
        %v276 = vpop.permute.xlu0 %275
        %v278 = vlaneseq
        %v279 = vshrl.u32 %v278, 7
        %v280 = vsub.s32 0, %v279
        %v281 = vrot.slane %v262, %v280
        %v282 = vmul.f32 %v266, %v281
        %v283 = vmul.f32 %v271, %v281
        %v284 = vmul.f32 %v276, %v281
        %v285 = vadd.f32 %v261, %v282
        %v286 = vadd.f32 %v261, %v283
        %v287 = vadd.f32 %v261, %v284
        %v288 = vld [vmem:[#allocation2 + $0x1] sm:$0x1]
        %289 = vset.pattern.permute.xlu0 1
        %290 = vperm.xlu0 %289, %v254
        %v291 = vpop.permute.xlu0 %290
        %293 = vset.pattern.permute.xlu0 1
        %294 = vperm.xlu0 %293, %v255
        %v295 = vpop.permute.xlu0 %294
        %297 = vset.pattern.permute.xlu0 1
        %298 = vperm.xlu0 %297, %v256
        %v299 = vpop.permute.xlu0 %298
        %v301 = vlaneseq
        %v302 = vshrl.u32 %v301, 7
        %v303 = vsub.s32 0, %v302
        %v304 = vrot.slane %v288, %v303
        %v305 = vmul.f32 %v291, %v304
        %v306 = vmul.f32 %v295, %v304
        %v307 = vmul.f32 %v299, %v304
        %v308 = vadd.f32 %v285, %v305
        %v309 = vadd.f32 %v286, %v306
        %v310 = vadd.f32 %v287, %v307
        %v311 = vld [vmem:[#allocation2 + $0x2] sm:$0x1]
        %312 = vset.pattern.permute.xlu0 2
        %313 = vperm.xlu0 %312, %v254
        %v314 = vpop.permute.xlu0 %313
        %316 = vset.pattern.permute.xlu0 2
        %317 = vperm.xlu0 %316, %v255
        %v318 = vpop.permute.xlu0 %317
        %320 = vset.pattern.permute.xlu0 2
        %321 = vperm.xlu0 %320, %v256
        %v322 = vpop.permute.xlu0 %321
        %v324 = vlaneseq
        %v325 = vshrl.u32 %v324, 7
        %v326 = vsub.s32 0, %v325
        %v327 = vrot.slane %v311, %v326
        %v328 = vmul.f32 %v314, %v327
        %v329 = vmul.f32 %v318, %v327
        %v330 = vmul.f32 %v322, %v327
        %v331 = vadd.f32 %v308, %v328
        %v332 = vadd.f32 %v309, %v329
        %v333 = vadd.f32 %v310, %v330
        %v334 = vmax.f32 %v331, 0.0
        %v335 = vmax.f32 %v332, 0.0
        %v336 = vmax.f32 %v333, 0.0
        %v337 = vld [vmem:[#allocation2 + $0x8] sm:$0xff]
        %v338 = vld [vmem:[#allocation2 + $0x10] sm:$0xff]
        %v339 = vld [vmem:[#allocation2 + $0x18] sm:$0xff]
        %v340 = vld [vmem:[#allocation2 + $0x20] sm:$0xff]
        %v341 = vld [vmem:[%s4 + $0x4] sm:$0x1]
        %v342 = vlaneseq
        %v343 = vshrl.u32 %v342, 7
        %v344 = vsub.s32 0, %v343
        %v345 = vrot.slane %v341, %v344
        %vm346 = vcmask 261120
        %v348 = vsel %vm346, %v334, 0
        %v351 = vsel %vm346, %v335, 0
        %v354 = vsel %vm346, %v336, 0
        %356 = vmatprep.subr.mxu0 0.0
        %357 = vmatpush1.msra.mxu0 %v337
        %358 = vmatprep.subr.mxu0 0.0
        %359 = vmatpush1.msra.mxu0 %v338
        %360 = vmatprep.subr.mxu0 0.0
        %361 = vmatpush1.msra.mxu0 %v339
        %362 = vmatprep.subr.mxu0 0.0
        %363 = vmatpush1.msra.mxu0 %v340
        %364 = vmatprep.subr.mxu0 0.0
        %365 = vmatpush1.msra.mxu0 0.0
        %366 = vmatprep.subr.mxu0 0.0
        %367 = vmatpush1.msra.mxu0 0.0
        %368 = vmatprep.subr.mxu0 0.0
        %369 = vmatpush1.msra.mxu0 0.0
        %370 = vmatprep.subr.mxu0 0.0
        %371 = vmatpush1.msra.mxu0 0.0
        %372 = vmatprep.subr.mxu0 0.0
        %373 = vmatpush1.msra.mxu0 0.0
        %374 = vmatprep.subr.mxu0 0.0
        %375 = vmatpush1.msra.mxu0 0.0
        %376 = vmatprep.subr.mxu0 0.0
        %377 = vmatpush1.msra.mxu0 0.0
        %378 = vmatprep.subr.mxu0 0.0
        %379 = vmatpush1.msra.mxu0 0.0
        %380 = vmatprep.subr.mxu0 0.0
        %381 = vmatpush1.msra.mxu0 0.0
        %382 = vmatprep.subr.mxu0 0.0
        %383 = vmatpush1.msra.mxu0 0.0
        %384 = vmatprep.subr.mxu0 0.0
        %385 = vmatpush1.msra.mxu0 0.0
        %386 = vmatprep.subr.mxu0 0.0
        %387 = vmatpush1.msra.mxu0 0.0
        %388 = vmatprep.subr.mxu0 0.0
        %389 = vmatpush1.msra.mxu0 0.0
        %390 = vmatprep.subr.mxu0 0.0
        %391 = vmatpush1.msra.mxu0 0.0
        %392 = vmatprep.subr.mxu0 0.0
        %393 = vmatpush1.msra.mxu0 0.0
        %394 = vmatprep.subr.mxu0 0.0
        %395 = vmatpush1.msra.mxu0 0.0
        %396 = vmatprep.subr.mxu0 0.0
        %397 = vmatpush1.msra.mxu0 0.0
        %398 = vmatprep.subr.mxu0 0.0
        %399 = vmatpush1.msra.mxu0 0.0
        %400 = vmatprep.subr.mxu0 0.0
        %401 = vmatpush1.msra.mxu0 0.0
        %402 = vmatprep.subr.mxu0 0.0
        %403 = vmatpush1.msra.mxu0 0.0
        %404 = vmatprep.subr.mxu0 0.0
        %405 = vmatpush1.msra.mxu0 0.0
        %406 = vmatprep.subr.mxu0 0.0
        %407 = vmatpush1.msra.mxu0 0.0
        %408 = vmatprep.subr.mxu0 0.0
        %409 = vmatpush1.msra.mxu0 0.0
        %410 = vmatprep.subr.mxu0 0.0
        %411 = vmatpush1.msra.mxu0 0.0
        %412 = vmatprep.subr.mxu0 0.0
        %413 = vmatpush1.msra.mxu0 0.0
        %414 = vmatprep.subr.mxu0 0.0
        %415 = vmatpush1.msra.mxu0 0.0
        %416 = vmatprep.subr.mxu0 0.0
        %417 = vmatpush1.msra.mxu0 0.0
        %418 = vmatprep.subr.mxu0 0.0
        %419 = vmatpush1.msra.mxu0 0.0
        %420 = vmatprep.mubr.f32.mxu0 0.0
        %421 = vmatmul.mubr.f32.gmra.mrb[0].mxu0 %v348
        %v422 = vpop.f32.mrb[0].mxu0
        %v423 = vadd.f32 %v345, %v422
        %v424 = vpop.f32.mrb[0].mxu0
        %425 = vmatprep.mubr.f32.mxu0 0.0
        %426 = vmatmul.mubr.f32.gmra.mrb[0].mxu0 %v351
        %v427 = vpop.f32.mrb[0].mxu0
        %v428 = vadd.f32 %v345, %v427
        %v429 = vpop.f32.mrb[0].mxu0
        %430 = vmatprep.mubr.f32.mxu0 0.0
        %431 = vmatmul.mubr.f32.gmra.mrb[0].mxu0 %v354
        %v432 = vpop.f32.mrb[0].mxu0
        %v433 = vadd.f32 %v345, %v432
        %v434 = vpop.f32.mrb[0].mxu0
        %435 = vdwg.mxu0
        %v436 = vmax.f32 %v423, 0.0
        %v437 = vmax.f32 %v428, 0.0
        %v438 = vmax.f32 %v433, 0.0
        %v439 = vld [vmem:[%s4 + $0x5] sm:$0x1]
        %v440 = vlaneseq
        %v441 = vshrl.u32 %v440, 7
        %v442 = vsub.s32 0, %v441
        %v443 = vrot.slane %v439, %v442
        %v444 = vmul.f32 %v436, %v443
        %v445 = vmul.f32 %v437, %v443
        %v446 = vmul.f32 %v438, %v443
        %v447 = vsel %vm346, %v444, 0.0
        %448 = vadd.xlane.f32.xlu0 %v447
        %v449 = vpop.xlane.xlu0 %448
        %v450 = vsel %vm346, %v445, 0.0
        %451 = vadd.xlane.f32.xlu0 %v450
        %v452 = vpop.xlane.xlu0 %451
        %v453 = vsel %vm346, %v446, 0.0
        %454 = vadd.xlane.f32.xlu0 %v453
        %v455 = vpop.xlane.xlu0 %454
        %v456 = vld [vmem:[%s4 + $0x6] sm:$0x1]
        %v457 = vlaneseq
        %v458 = vshrl.u32 %v457, 7
        %v459 = vsub.s32 0, %v458
        %v460 = vrot.slane %v456, %v459
        %v461 = vadd.f32 %v449, %v460
        %v462 = vadd.f32 %v452, %v460
        %v463 = vadd.f32 %v455, %v460
        %v464 = vld [vmem:[%s2] sm:$0x1]
        %v465 = vld [vmem:[%s2 + $0x1] sm:$0x1]
        %v466 = vld [vmem:[%s2 + $0x2] sm:$0x1]
        %v467 = vld [vmem:[%s2 + $0x3] sm:$0x1]
        %v468 = vld [vmem:[%s2 + $0x4] sm:$0x1]
        %v469 = vld [vmem:[%s2 + $0x5] sm:$0x1]
        %v470 = vld [vmem:[%s2 + $0x6] sm:$0x1]
        %v471 = vld [vmem:[%s2 + $0x7] sm:$0x1]
        %v472 = vld [vmem:[%s2 + $0x8] sm:$0x1]
        %v473 = vld [vmem:[%s2 + $0x9] sm:$0x1]
        %v474 = vld [vmem:[%s2 + $0xa] sm:$0x1]
        %v475 = vld [vmem:[%s2 + $0xb] sm:$0x1]
        %v476 = vld [vmem:[%s2 + $0xc] sm:$0x1]
        %v477 = vld [vmem:[%s2 + $0xd] sm:$0x1]
        %v478 = vld [vmem:[%s2 + $0xe] sm:$0x1]
        %v479 = vld [vmem:[%s2 + $0xf] sm:$0x1]
        %481 = vset.pattern.permute.xlu0 0
        %482 = vperm.xlu0 %481, %v250
        %v483 = vpop.permute.xlu0 %482
        %486 = vset.pattern.permute.xlu0 0
        %487 = vperm.xlu0 %486, %v251
        %v488 = vpop.permute.xlu0 %487
        %491 = vset.pattern.permute.xlu0 0
        %492 = vperm.xlu0 %491, %v252
        %v493 = vpop.permute.xlu0 %492
        %v511 = vlaneseq
        %v512 = vshrl.u32 %v511, 7
        %v513 = vsub.s32 0, %v512
        %v514 = vrot.slane %v464, %v513
        %v515 = vlaneseq
        %v516 = vshrl.u32 %v515, 7
        %v517 = vsub.s32 0, %v516
        %v518 = vrot.slane %v465, %v517
        %v519 = vlaneseq
        %v520 = vshrl.u32 %v519, 7
        %v521 = vsub.s32 0, %v520
        %v522 = vrot.slane %v466, %v521
        %v523 = vlaneseq
        %v524 = vshrl.u32 %v523, 7
        %v525 = vsub.s32 0, %v524
        %v526 = vrot.slane %v467, %v525
        %v527 = vlaneseq
        %v528 = vshrl.u32 %v527, 7
        %v529 = vsub.s32 0, %v528
        %v530 = vrot.slane %v468, %v529
        %v531 = vlaneseq
        %v532 = vshrl.u32 %v531, 7
        %v533 = vsub.s32 0, %v532
        %v534 = vrot.slane %v469, %v533
        %v535 = vlaneseq
        %v536 = vshrl.u32 %v535, 7
        %v537 = vsub.s32 0, %v536
        %v538 = vrot.slane %v470, %v537
        %v539 = vlaneseq
        %v540 = vshrl.u32 %v539, 7
        %v541 = vsub.s32 0, %v540
        %v542 = vrot.slane %v471, %v541
        %v543 = vlaneseq
        %v544 = vshrl.u32 %v543, 7
        %v545 = vsub.s32 0, %v544
        %v546 = vrot.slane %v472, %v545
        %v547 = vlaneseq
        %v548 = vshrl.u32 %v547, 7
        %v549 = vsub.s32 0, %v548
        %v550 = vrot.slane %v473, %v549
        %v551 = vlaneseq
        %v552 = vshrl.u32 %v551, 7
        %v553 = vsub.s32 0, %v552
        %v554 = vrot.slane %v474, %v553
        %v555 = vlaneseq
        %v556 = vshrl.u32 %v555, 7
        %v557 = vsub.s32 0, %v556
        %v558 = vrot.slane %v475, %v557
        %v559 = vlaneseq
        %v560 = vshrl.u32 %v559, 7
        %v561 = vsub.s32 0, %v560
        %v562 = vrot.slane %v476, %v561
        %v563 = vlaneseq
        %v564 = vshrl.u32 %v563, 7
        %v565 = vsub.s32 0, %v564
        %v566 = vrot.slane %v477, %v565
        %v567 = vlaneseq
        %v568 = vshrl.u32 %v567, 7
        %v569 = vsub.s32 0, %v568
        %v570 = vrot.slane %v478, %v569
        %v571 = vlaneseq
        %v572 = vshrl.u32 %v571, 7
        %v573 = vsub.s32 0, %v572
        %v574 = vrot.slane %v479, %v573
        %v591 = vmul.f32 %v483, %v514
        %v592 = vmul.f32 %v488, %v514
        %v593 = vmul.f32 %v493, %v514
        %v594 = vmul.f32 %v483, %v518
        %v595 = vmul.f32 %v488, %v518
        %v596 = vmul.f32 %v493, %v518
        %v597 = vmul.f32 %v483, %v522
        %v598 = vmul.f32 %v488, %v522
        %v599 = vmul.f32 %v493, %v522
        %v600 = vmul.f32 %v483, %v526
        %v601 = vmul.f32 %v488, %v526
        %v602 = vmul.f32 %v493, %v526
        %v603 = vmul.f32 %v483, %v530
        %v604 = vmul.f32 %v488, %v530
        %v605 = vmul.f32 %v493, %v530
        %v606 = vmul.f32 %v483, %v534
        %v607 = vmul.f32 %v488, %v534
        %v608 = vmul.f32 %v493, %v534
        %v609 = vmul.f32 %v483, %v538
        %v610 = vmul.f32 %v488, %v538
        %v611 = vmul.f32 %v493, %v538
        %v612 = vmul.f32 %v483, %v542
        %v613 = vmul.f32 %v488, %v542
        %v614 = vmul.f32 %v493, %v542
        %v615 = vmul.f32 %v483, %v546
        %v616 = vmul.f32 %v488, %v546
        %v617 = vmul.f32 %v493, %v546
        %v618 = vmul.f32 %v483, %v550
        %v619 = vmul.f32 %v488, %v550
        %v620 = vmul.f32 %v493, %v550
        %v621 = vmul.f32 %v483, %v554
        %v622 = vmul.f32 %v488, %v554
        %v623 = vmul.f32 %v493, %v554
        %v624 = vmul.f32 %v483, %v558
        %v625 = vmul.f32 %v488, %v558
        %v626 = vmul.f32 %v493, %v558
        %v627 = vmul.f32 %v483, %v562
        %v628 = vmul.f32 %v488, %v562
        %v629 = vmul.f32 %v493, %v562
        %v630 = vmul.f32 %v483, %v566
        %v631 = vmul.f32 %v488, %v566
        %v632 = vmul.f32 %v493, %v566
        %v633 = vmul.f32 %v483, %v570
        %v634 = vmul.f32 %v488, %v570
        %v635 = vmul.f32 %v493, %v570
        %v636 = vmul.f32 %v483, %v574
        %v637 = vmul.f32 %v488, %v574
        %v638 = vmul.f32 %v493, %v574
        %v639 = vld [vmem:[%s4] sm:$0x1]
        %v640 = vld [vmem:[%s4 + $0x1] sm:$0x1]
        %v641 = vlaneseq
        %v642 = vshrl.u32 %v641, 7
        %v643 = vsub.s32 0, %v642
        %v644 = vrot.slane %v639, %v643
        %v645 = vmul.f32 %v591, %v644
        %v646 = vmul.f32 %v592, %v644
        %v647 = vmul.f32 %v593, %v644
        %v648 = vmul.f32 %v594, %v644
        %v649 = vmul.f32 %v595, %v644
        %v650 = vmul.f32 %v596, %v644
        %v651 = vmul.f32 %v597, %v644
        %v652 = vmul.f32 %v598, %v644
        %v653 = vmul.f32 %v599, %v644
        %v654 = vmul.f32 %v600, %v644
        %v655 = vmul.f32 %v601, %v644
        %v656 = vmul.f32 %v602, %v644
        %v657 = vmul.f32 %v603, %v644
        %v658 = vmul.f32 %v604, %v644
        %v659 = vmul.f32 %v605, %v644
        %v660 = vmul.f32 %v606, %v644
        %v661 = vmul.f32 %v607, %v644
        %v662 = vmul.f32 %v608, %v644
        %v663 = vmul.f32 %v609, %v644
        %v664 = vmul.f32 %v610, %v644
        %v665 = vmul.f32 %v611, %v644
        %v666 = vmul.f32 %v612, %v644
        %v667 = vmul.f32 %v613, %v644
        %v668 = vmul.f32 %v614, %v644
        %v669 = vmul.f32 %v615, %v644
        %v670 = vmul.f32 %v616, %v644
        %v671 = vmul.f32 %v617, %v644
        %v672 = vmul.f32 %v618, %v644
        %v673 = vmul.f32 %v619, %v644
        %v674 = vmul.f32 %v620, %v644
        %v675 = vmul.f32 %v621, %v644
        %v676 = vmul.f32 %v622, %v644
        %v677 = vmul.f32 %v623, %v644
        %v678 = vmul.f32 %v624, %v644
        %v679 = vmul.f32 %v625, %v644
        %v680 = vmul.f32 %v626, %v644
        %v681 = vmul.f32 %v627, %v644
        %v682 = vmul.f32 %v628, %v644
        %v683 = vmul.f32 %v629, %v644
        %v684 = vmul.f32 %v630, %v644
        %v685 = vmul.f32 %v631, %v644
        %v686 = vmul.f32 %v632, %v644
        %v687 = vmul.f32 %v633, %v644
        %v688 = vmul.f32 %v634, %v644
        %v689 = vmul.f32 %v635, %v644
        %v690 = vmul.f32 %v636, %v644
        %v691 = vmul.f32 %v637, %v644
        %v692 = vmul.f32 %v638, %v644
        %v693 = vlaneseq
        %v694 = vshrl.u32 %v693, 7
        %v695 = vsub.s32 0, %v694
        %v696 = vrot.slane %v640, %v695
        %v697 = vadd.f32 %v645, %v696
        %v698 = vadd.f32 %v646, %v696
        %v699 = vadd.f32 %v647, %v696
        %v700 = vadd.f32 %v648, %v696
        %v701 = vadd.f32 %v649, %v696
        %v702 = vadd.f32 %v650, %v696
        %v703 = vadd.f32 %v651, %v696
        %v704 = vadd.f32 %v652, %v696
        %v705 = vadd.f32 %v653, %v696
        %v706 = vadd.f32 %v654, %v696
        %v707 = vadd.f32 %v655, %v696
        %v708 = vadd.f32 %v656, %v696
        %v709 = vadd.f32 %v657, %v696
        %v710 = vadd.f32 %v658, %v696
        %v711 = vadd.f32 %v659, %v696
        %v712 = vadd.f32 %v660, %v696
        %v713 = vadd.f32 %v661, %v696
        %v714 = vadd.f32 %v662, %v696
        %v715 = vadd.f32 %v663, %v696
        %v716 = vadd.f32 %v664, %v696
        %v717 = vadd.f32 %v665, %v696
        %v718 = vadd.f32 %v666, %v696
        %v719 = vadd.f32 %v667, %v696
        %v720 = vadd.f32 %v668, %v696
        %v721 = vadd.f32 %v669, %v696
        %v722 = vadd.f32 %v670, %v696
        %v723 = vadd.f32 %v671, %v696
        %v724 = vadd.f32 %v672, %v696
        %v725 = vadd.f32 %v673, %v696
        %v726 = vadd.f32 %v674, %v696
        %v727 = vadd.f32 %v675, %v696
        %v728 = vadd.f32 %v676, %v696
        %v729 = vadd.f32 %v677, %v696
        %v730 = vadd.f32 %v678, %v696
        %v731 = vadd.f32 %v679, %v696
        %v732 = vadd.f32 %v680, %v696
        %v733 = vadd.f32 %v681, %v696
        %v734 = vadd.f32 %v682, %v696
        %v735 = vadd.f32 %v683, %v696
        %v736 = vadd.f32 %v684, %v696
        %v737 = vadd.f32 %v685, %v696
        %v738 = vadd.f32 %v686, %v696
        %v739 = vadd.f32 %v687, %v696
        %v740 = vadd.f32 %v688, %v696
        %v741 = vadd.f32 %v689, %v696
        %v742 = vadd.f32 %v690, %v696
        %v743 = vadd.f32 %v691, %v696
        %v744 = vadd.f32 %v692, %v696
        %v745 = vmax.f32 %v697, 0.0
        %v746 = vmax.f32 %v698, 0.0
        %v747 = vmax.f32 %v699, 0.0
        %v748 = vmax.f32 %v700, 0.0
        %v749 = vmax.f32 %v701, 0.0
        %v750 = vmax.f32 %v702, 0.0
        %v751 = vmax.f32 %v703, 0.0
        %v752 = vmax.f32 %v704, 0.0
        %v753 = vmax.f32 %v705, 0.0
        %v754 = vmax.f32 %v706, 0.0
        %v755 = vmax.f32 %v707, 0.0
        %v756 = vmax.f32 %v708, 0.0
        %v757 = vmax.f32 %v709, 0.0
        %v758 = vmax.f32 %v710, 0.0
        %v759 = vmax.f32 %v711, 0.0
        %v760 = vmax.f32 %v712, 0.0
        %v761 = vmax.f32 %v713, 0.0
        %v762 = vmax.f32 %v714, 0.0
        %v763 = vmax.f32 %v715, 0.0
        %v764 = vmax.f32 %v716, 0.0
        %v765 = vmax.f32 %v717, 0.0
        %v766 = vmax.f32 %v718, 0.0
        %v767 = vmax.f32 %v719, 0.0
        %v768 = vmax.f32 %v720, 0.0
        %v769 = vmax.f32 %v721, 0.0
        %v770 = vmax.f32 %v722, 0.0
        %v771 = vmax.f32 %v723, 0.0
        %v772 = vmax.f32 %v724, 0.0
        %v773 = vmax.f32 %v725, 0.0
        %v774 = vmax.f32 %v726, 0.0
        %v775 = vmax.f32 %v727, 0.0
        %v776 = vmax.f32 %v728, 0.0
        %v777 = vmax.f32 %v729, 0.0
        %v778 = vmax.f32 %v730, 0.0
        %v779 = vmax.f32 %v731, 0.0
        %v780 = vmax.f32 %v732, 0.0
        %v781 = vmax.f32 %v733, 0.0
        %v782 = vmax.f32 %v734, 0.0
        %v783 = vmax.f32 %v735, 0.0
        %v784 = vmax.f32 %v736, 0.0
        %v785 = vmax.f32 %v737, 0.0
        %v786 = vmax.f32 %v738, 0.0
        %v787 = vmax.f32 %v739, 0.0
        %v788 = vmax.f32 %v740, 0.0
        %v789 = vmax.f32 %v741, 0.0
        %v790 = vmax.f32 %v742, 0.0
        %v791 = vmax.f32 %v743, 0.0
        %v792 = vmax.f32 %v744, 0.0
        %v793 = vld [vmem:[#allocation2 + $0x28] sm:$0xff]
        %v794 = vld [vmem:[#allocation2 + $0x30] sm:$0xff]
        %v795 = vld [vmem:[#allocation2 + $0x38] sm:$0xff]
        %v796 = vld [vmem:[#allocation2 + $0x40] sm:$0xff]
        %v797 = vld [vmem:[#allocation2 + $0x48] sm:$0xff]
        %v798 = vld [vmem:[#allocation2 + $0x50] sm:$0xff]
        %v799 = vld [vmem:[#allocation2 + $0x58] sm:$0xff]
        %v800 = vld [vmem:[#allocation2 + $0x60] sm:$0xff]
        %v801 = vld [vmem:[#allocation2 + $0x68] sm:$0xff]
        %v802 = vld [vmem:[#allocation2 + $0x70] sm:$0xff]
        %v803 = vld [vmem:[#allocation2 + $0x78] sm:$0xff]
        %v804 = vld [vmem:[#allocation2 + $0x80] sm:$0xff]
        %v805 = vld [vmem:[#allocation2 + $0x88] sm:$0xff]
        %v806 = vld [vmem:[#allocation2 + $0x90] sm:$0xff]
        %v807 = vld [vmem:[#allocation2 + $0x98] sm:$0xff]
        %v808 = vld [vmem:[#allocation2 + $0xa0] sm:$0xff]
        %v809 = vld [vmem:[%s4 + $0x2] sm:$0x1]
        %v810 = vlaneseq
        %v811 = vshrl.u32 %v810, 7
        %v812 = vsub.s32 0, %v811
        %v813 = vrot.slane %v809, %v812
        %814 = vmatprep.subr.mxu0 0.0
        %815 = vmatpush1.msra.mxu0 %v793
        %816 = vmatprep.subr.mxu0 0.0
        %817 = vmatpush1.msra.mxu0 %v794
        %818 = vmatprep.subr.mxu0 0.0
        %819 = vmatpush1.msra.mxu0 %v795
        %820 = vmatprep.subr.mxu0 0.0
        %821 = vmatpush1.msra.mxu0 %v796
        %822 = vmatprep.subr.mxu0 0.0
        %823 = vmatpush1.msra.mxu0 %v797
        %824 = vmatprep.subr.mxu0 0.0
        %825 = vmatpush1.msra.mxu0 %v798
        %826 = vmatprep.subr.mxu0 0.0
        %827 = vmatpush1.msra.mxu0 %v799
        %828 = vmatprep.subr.mxu0 0.0
        %829 = vmatpush1.msra.mxu0 %v800
        %830 = vmatprep.subr.mxu0 0.0
        %831 = vmatpush1.msra.mxu0 %v801
        %832 = vmatprep.subr.mxu0 0.0
        %833 = vmatpush1.msra.mxu0 %v802
        %834 = vmatprep.subr.mxu0 0.0
        %835 = vmatpush1.msra.mxu0 %v803
        %836 = vmatprep.subr.mxu0 0.0
        %837 = vmatpush1.msra.mxu0 %v804
        %838 = vmatprep.subr.mxu0 0.0
        %839 = vmatpush1.msra.mxu0 %v805
        %840 = vmatprep.subr.mxu0 0.0
        %841 = vmatpush1.msra.mxu0 %v806
        %842 = vmatprep.subr.mxu0 0.0
        %843 = vmatpush1.msra.mxu0 %v807
        %844 = vmatprep.subr.mxu0 0.0
        %845 = vmatpush1.msra.mxu0 %v808
        %846 = vmatprep.subr.mxu0 0.0
        %847 = vmatpush1.msra.mxu0 0.0
        %848 = vmatprep.subr.mxu0 0.0
        %849 = vmatpush1.msra.mxu0 0.0
        %850 = vmatprep.subr.mxu0 0.0
        %851 = vmatpush1.msra.mxu0 0.0
        %852 = vmatprep.subr.mxu0 0.0
        %853 = vmatpush1.msra.mxu0 0.0
        %854 = vmatprep.subr.mxu0 0.0
        %855 = vmatpush1.msra.mxu0 0.0
        %856 = vmatprep.subr.mxu0 0.0
        %857 = vmatpush1.msra.mxu0 0.0
        %858 = vmatprep.subr.mxu0 0.0
        %859 = vmatpush1.msra.mxu0 0.0
        %860 = vmatprep.subr.mxu0 0.0
        %861 = vmatpush1.msra.mxu0 0.0
        %862 = vmatprep.subr.mxu0 0.0
        %863 = vmatpush1.msra.mxu0 0.0
        %864 = vmatprep.subr.mxu0 0.0
        %865 = vmatpush1.msra.mxu0 0.0
        %866 = vmatprep.subr.mxu0 0.0
        %867 = vmatpush1.msra.mxu0 0.0
        %868 = vmatprep.subr.mxu0 0.0
        %869 = vmatpush1.msra.mxu0 0.0
        %870 = vmatprep.subr.mxu0 0.0
        %871 = vmatpush1.msra.mxu0 0.0
        %872 = vmatprep.subr.mxu0 0.0
        %873 = vmatpush1.msra.mxu0 0.0
        %874 = vmatprep.subr.mxu0 0.0
        %875 = vmatpush1.msra.mxu0 0.0
        %876 = vmatprep.subr.mxu0 0.0
        %877 = vmatpush1.msra.mxu0 0.0
        %878 = vmatprep.mubr.f32.mxu0 0.0
        %879 = vmatmul.mubr.f32.gmra.mrb[0].mxu0 %v745
        %v880 = vpop.f32.mrb[0].mxu0
        %v881 = vadd.f32 %v813, %v880
        %v882 = vpop.f32.mrb[0].mxu0
        %883 = vmatprep.mubr.f32.mxu0 0.0
        %884 = vmatmul.mubr.f32.gmra.mrb[0].mxu0 %v746
        %v885 = vpop.f32.mrb[0].mxu0
        %v886 = vadd.f32 %v813, %v885
        %v887 = vpop.f32.mrb[0].mxu0
        %888 = vmatprep.mubr.f32.mxu0 0.0
        %889 = vmatmul.mubr.f32.gmra.mrb[0].mxu0 %v747
        %v890 = vpop.f32.mrb[0].mxu0
        %v891 = vadd.f32 %v813, %v890
        %v892 = vpop.f32.mrb[0].mxu0
        %893 = vmatprep.mubr.f32.mxu0 0.0
        %894 = vmatmul.mubr.f32.gmra.mrb[0].mxu0 %v748
        %v895 = vpop.f32.mrb[0].mxu0
        %v896 = vadd.f32 %v813, %v895
        %v897 = vpop.f32.mrb[0].mxu0
        %898 = vmatprep.mubr.f32.mxu0 0.0
        %899 = vmatmul.mubr.f32.gmra.mrb[0].mxu0 %v749
        %v900 = vpop.f32.mrb[0].mxu0
        %v901 = vadd.f32 %v813, %v900
        %v902 = vpop.f32.mrb[0].mxu0
        %903 = vmatprep.mubr.f32.mxu0 0.0
        %904 = vmatmul.mubr.f32.gmra.mrb[0].mxu0 %v750
        %v905 = vpop.f32.mrb[0].mxu0
        %v906 = vadd.f32 %v813, %v905
        %v907 = vpop.f32.mrb[0].mxu0
        %908 = vmatprep.mubr.f32.mxu0 0.0
        %909 = vmatmul.mubr.f32.gmra.mrb[0].mxu0 %v751
        %v910 = vpop.f32.mrb[0].mxu0
        %v911 = vadd.f32 %v813, %v910
        %v912 = vpop.f32.mrb[0].mxu0
        %913 = vmatprep.mubr.f32.mxu0 0.0
        %914 = vmatmul.mubr.f32.gmra.mrb[0].mxu0 %v752
        %v915 = vpop.f32.mrb[0].mxu0
        %v916 = vadd.f32 %v813, %v915
        %v917 = vpop.f32.mrb[0].mxu0
        %918 = vmatprep.mubr.f32.mxu0 0.0
        %919 = vmatmul.mubr.f32.gmra.mrb[0].mxu0 %v753
        %v920 = vpop.f32.mrb[0].mxu0
        %v921 = vadd.f32 %v813, %v920
        %v922 = vpop.f32.mrb[0].mxu0
        %923 = vmatprep.mubr.f32.mxu0 0.0
        %924 = vmatmul.mubr.f32.gmra.mrb[0].mxu0 %v754
        %v925 = vpop.f32.mrb[0].mxu0
        %v926 = vadd.f32 %v813, %v925
        %v927 = vpop.f32.mrb[0].mxu0
        %928 = vmatprep.mubr.f32.mxu0 0.0
        %929 = vmatmul.mubr.f32.gmra.mrb[0].mxu0 %v755
        %v930 = vpop.f32.mrb[0].mxu0
        %v931 = vadd.f32 %v813, %v930
        %v932 = vpop.f32.mrb[0].mxu0
        %933 = vmatprep.mubr.f32.mxu0 0.0
        %934 = vmatmul.mubr.f32.gmra.mrb[0].mxu0 %v756
        %v935 = vpop.f32.mrb[0].mxu0
        %v936 = vadd.f32 %v813, %v935
        %v937 = vpop.f32.mrb[0].mxu0
        %938 = vmatprep.mubr.f32.mxu0 0.0
        %939 = vmatmul.mubr.f32.gmra.mrb[0].mxu0 %v757
        %v940 = vpop.f32.mrb[0].mxu0
        %v941 = vadd.f32 %v813, %v940
        %v942 = vpop.f32.mrb[0].mxu0
        %943 = vmatprep.mubr.f32.mxu0 0.0
        %944 = vmatmul.mubr.f32.gmra.mrb[0].mxu0 %v758
        %v945 = vpop.f32.mrb[0].mxu0
        %v946 = vadd.f32 %v813, %v945
        %v947 = vpop.f32.mrb[0].mxu0
        %948 = vmatprep.mubr.f32.mxu0 0.0
        %949 = vmatmul.mubr.f32.gmra.mrb[0].mxu0 %v759
        %v950 = vpop.f32.mrb[0].mxu0
        %v951 = vadd.f32 %v813, %v950
        %v952 = vpop.f32.mrb[0].mxu0
        %953 = vmatprep.mubr.f32.mxu0 0.0
        %954 = vmatmul.mubr.f32.gmra.mrb[0].mxu0 %v760
        %v955 = vpop.f32.mrb[0].mxu0
        %v956 = vadd.f32 %v813, %v955
        %v957 = vpop.f32.mrb[0].mxu0
        %958 = vmatprep.mubr.f32.mxu0 0.0
        %959 = vmatmul.mubr.f32.gmra.mrb[0].mxu0 %v761
        %v960 = vpop.f32.mrb[0].mxu0
        %v961 = vadd.f32 %v813, %v960
        %v962 = vpop.f32.mrb[0].mxu0
        %963 = vmatprep.mubr.f32.mxu0 0.0
        %964 = vmatmul.mubr.f32.gmra.mrb[0].mxu0 %v762
        %v965 = vpop.f32.mrb[0].mxu0
        %v966 = vadd.f32 %v813, %v965
        %v967 = vpop.f32.mrb[0].mxu0
        %968 = vmatprep.mubr.f32.mxu0 0.0
        %969 = vmatmul.mubr.f32.gmra.mrb[0].mxu0 %v763
        %v970 = vpop.f32.mrb[0].mxu0
        %v971 = vadd.f32 %v813, %v970
        %v972 = vpop.f32.mrb[0].mxu0
        %973 = vmatprep.mubr.f32.mxu0 0.0
        %974 = vmatmul.mubr.f32.gmra.mrb[0].mxu0 %v764
        %v975 = vpop.f32.mrb[0].mxu0
        %v976 = vadd.f32 %v813, %v975
        %v977 = vpop.f32.mrb[0].mxu0
        %978 = vmatprep.mubr.f32.mxu0 0.0
        %979 = vmatmul.mubr.f32.gmra.mrb[0].mxu0 %v765
        %v980 = vpop.f32.mrb[0].mxu0
        %v981 = vadd.f32 %v813, %v980
        %v982 = vpop.f32.mrb[0].mxu0
        %983 = vmatprep.mubr.f32.mxu0 0.0
        %984 = vmatmul.mubr.f32.gmra.mrb[0].mxu0 %v766
        %v985 = vpop.f32.mrb[0].mxu0
        %v986 = vadd.f32 %v813, %v985
        %v987 = vpop.f32.mrb[0].mxu0
        %988 = vmatprep.mubr.f32.mxu0 0.0
        %989 = vmatmul.mubr.f32.gmra.mrb[0].mxu0 %v767
        %v990 = vpop.f32.mrb[0].mxu0
        %v991 = vadd.f32 %v813, %v990
        %v992 = vpop.f32.mrb[0].mxu0
        %993 = vmatprep.mubr.f32.mxu0 0.0
        %994 = vmatmul.mubr.f32.gmra.mrb[0].mxu0 %v768
        %v995 = vpop.f32.mrb[0].mxu0
        %v996 = vadd.f32 %v813, %v995
        %v997 = vpop.f32.mrb[0].mxu0
        %998 = vmatprep.mubr.f32.mxu0 0.0
        %999 = vmatmul.mubr.f32.gmra.mrb[0].mxu0 %v769
        %v1000 = vpop.f32.mrb[0].mxu0
        %v1001 = vadd.f32 %v813, %v1000
        %v1002 = vpop.f32.mrb[0].mxu0
        %1003 = vmatprep.mubr.f32.mxu0 0.0
        %1004 = vmatmul.mubr.f32.gmra.mrb[0].mxu0 %v770
        %v1005 = vpop.f32.mrb[0].mxu0
        %v1006 = vadd.f32 %v813, %v1005
        %v1007 = vpop.f32.mrb[0].mxu0
        %1008 = vmatprep.mubr.f32.mxu0 0.0
        %1009 = vmatmul.mubr.f32.gmra.mrb[0].mxu0 %v771
        %v1010 = vpop.f32.mrb[0].mxu0
        %v1011 = vadd.f32 %v813, %v1010
        %v1012 = vpop.f32.mrb[0].mxu0
        %1013 = vmatprep.mubr.f32.mxu0 0.0
        %1014 = vmatmul.mubr.f32.gmra.mrb[0].mxu0 %v772
        %v1015 = vpop.f32.mrb[0].mxu0
        %v1016 = vadd.f32 %v813, %v1015
        %v1017 = vpop.f32.mrb[0].mxu0
        %1018 = vmatprep.mubr.f32.mxu0 0.0
        %1019 = vmatmul.mubr.f32.gmra.mrb[0].mxu0 %v773
        %v1020 = vpop.f32.mrb[0].mxu0
        %v1021 = vadd.f32 %v813, %v1020
        %v1022 = vpop.f32.mrb[0].mxu0
        %1023 = vmatprep.mubr.f32.mxu0 0.0
        %1024 = vmatmul.mubr.f32.gmra.mrb[0].mxu0 %v774
        %v1025 = vpop.f32.mrb[0].mxu0
        %v1026 = vadd.f32 %v813, %v1025
        %v1027 = vpop.f32.mrb[0].mxu0
        %1028 = vmatprep.mubr.f32.mxu0 0.0
        %1029 = vmatmul.mubr.f32.gmra.mrb[0].mxu0 %v775
        %v1030 = vpop.f32.mrb[0].mxu0
        %v1031 = vadd.f32 %v813, %v1030
        %v1032 = vpop.f32.mrb[0].mxu0
        %1033 = vmatprep.mubr.f32.mxu0 0.0
        %1034 = vmatmul.mubr.f32.gmra.mrb[0].mxu0 %v776
        %v1035 = vpop.f32.mrb[0].mxu0
        %v1036 = vadd.f32 %v813, %v1035
        %v1037 = vpop.f32.mrb[0].mxu0
        %1038 = vmatprep.mubr.f32.mxu0 0.0
        %1039 = vmatmul.mubr.f32.gmra.mrb[0].mxu0 %v777
        %v1040 = vpop.f32.mrb[0].mxu0
        %v1041 = vadd.f32 %v813, %v1040
        %v1042 = vpop.f32.mrb[0].mxu0
        %1043 = vmatprep.mubr.f32.mxu0 0.0
        %1044 = vmatmul.mubr.f32.gmra.mrb[0].mxu0 %v778
        %v1045 = vpop.f32.mrb[0].mxu0
        %v1046 = vadd.f32 %v813, %v1045
        %v1047 = vpop.f32.mrb[0].mxu0
        %1048 = vmatprep.mubr.f32.mxu0 0.0
        %1049 = vmatmul.mubr.f32.gmra.mrb[0].mxu0 %v779
        %v1050 = vpop.f32.mrb[0].mxu0
        %v1051 = vadd.f32 %v813, %v1050
        %v1052 = vpop.f32.mrb[0].mxu0
        %1053 = vmatprep.mubr.f32.mxu0 0.0
        %1054 = vmatmul.mubr.f32.gmra.mrb[0].mxu0 %v780
        %v1055 = vpop.f32.mrb[0].mxu0
        %v1056 = vadd.f32 %v813, %v1055
        %v1057 = vpop.f32.mrb[0].mxu0
        %1058 = vmatprep.mubr.f32.mxu0 0.0
        %1059 = vmatmul.mubr.f32.gmra.mrb[0].mxu0 %v781
        %v1060 = vpop.f32.mrb[0].mxu0
        %v1061 = vadd.f32 %v813, %v1060
        %v1062 = vpop.f32.mrb[0].mxu0
        %1063 = vmatprep.mubr.f32.mxu0 0.0
        %1064 = vmatmul.mubr.f32.gmra.mrb[0].mxu0 %v782
        %v1065 = vpop.f32.mrb[0].mxu0
        %v1066 = vadd.f32 %v813, %v1065
        %v1067 = vpop.f32.mrb[0].mxu0
        %1068 = vmatprep.mubr.f32.mxu0 0.0
        %1069 = vmatmul.mubr.f32.gmra.mrb[0].mxu0 %v783
        %v1070 = vpop.f32.mrb[0].mxu0
        %v1071 = vadd.f32 %v813, %v1070
        %v1072 = vpop.f32.mrb[0].mxu0
        %1073 = vmatprep.mubr.f32.mxu0 0.0
        %1074 = vmatmul.mubr.f32.gmra.mrb[0].mxu0 %v784
        %v1075 = vpop.f32.mrb[0].mxu0
        %v1076 = vadd.f32 %v813, %v1075
        %v1077 = vpop.f32.mrb[0].mxu0
        %1078 = vmatprep.mubr.f32.mxu0 0.0
        %1079 = vmatmul.mubr.f32.gmra.mrb[0].mxu0 %v785
        %v1080 = vpop.f32.mrb[0].mxu0
        %v1081 = vadd.f32 %v813, %v1080
        %v1082 = vpop.f32.mrb[0].mxu0
        %1083 = vmatprep.mubr.f32.mxu0 0.0
        %1084 = vmatmul.mubr.f32.gmra.mrb[0].mxu0 %v786
        %v1085 = vpop.f32.mrb[0].mxu0
        %v1086 = vadd.f32 %v813, %v1085
        %v1087 = vpop.f32.mrb[0].mxu0
        %1088 = vmatprep.mubr.f32.mxu0 0.0
        %1089 = vmatmul.mubr.f32.gmra.mrb[0].mxu0 %v787
        %v1090 = vpop.f32.mrb[0].mxu0
        %v1091 = vadd.f32 %v813, %v1090
        %v1092 = vpop.f32.mrb[0].mxu0
        %1093 = vmatprep.mubr.f32.mxu0 0.0
        %1094 = vmatmul.mubr.f32.gmra.mrb[0].mxu0 %v788
        %v1095 = vpop.f32.mrb[0].mxu0
        %v1096 = vadd.f32 %v813, %v1095
        %v1097 = vpop.f32.mrb[0].mxu0
        %1098 = vmatprep.mubr.f32.mxu0 0.0
        %1099 = vmatmul.mubr.f32.gmra.mrb[0].mxu0 %v789
        %v1100 = vpop.f32.mrb[0].mxu0
        %v1101 = vadd.f32 %v813, %v1100
        %v1102 = vpop.f32.mrb[0].mxu0
        %1103 = vmatprep.mubr.f32.mxu0 0.0
        %1104 = vmatmul.mubr.f32.gmra.mrb[0].mxu0 %v790
        %v1105 = vpop.f32.mrb[0].mxu0
        %v1106 = vadd.f32 %v813, %v1105
        %v1107 = vpop.f32.mrb[0].mxu0
        %1108 = vmatprep.mubr.f32.mxu0 0.0
        %1109 = vmatmul.mubr.f32.gmra.mrb[0].mxu0 %v791
        %v1110 = vpop.f32.mrb[0].mxu0
        %v1111 = vadd.f32 %v813, %v1110
        %v1112 = vpop.f32.mrb[0].mxu0
        %1113 = vmatprep.mubr.f32.mxu0 0.0
        %1114 = vmatmul.mubr.f32.gmra.mrb[0].mxu0 %v792
        %v1115 = vpop.f32.mrb[0].mxu0
        %v1116 = vadd.f32 %v813, %v1115
        %v1117 = vpop.f32.mrb[0].mxu0
        %1118 = vdwg.mxu0
        %v1119 = vmax.f32 %v881, 0.0
        %v1120 = vmax.f32 %v886, 0.0
        %v1121 = vmax.f32 %v891, 0.0
        %v1122 = vmax.f32 %v896, 0.0
        %v1123 = vmax.f32 %v901, 0.0
        %v1124 = vmax.f32 %v906, 0.0
        %v1125 = vmax.f32 %v911, 0.0
        %v1126 = vmax.f32 %v916, 0.0
        %v1127 = vmax.f32 %v921, 0.0
        %v1128 = vmax.f32 %v926, 0.0
        %v1129 = vmax.f32 %v931, 0.0
        %v1130 = vmax.f32 %v936, 0.0
        %v1131 = vmax.f32 %v941, 0.0
        %v1132 = vmax.f32 %v946, 0.0
        %v1133 = vmax.f32 %v951, 0.0
        %v1134 = vmax.f32 %v956, 0.0
        %v1135 = vmax.f32 %v961, 0.0
        %v1136 = vmax.f32 %v966, 0.0
        %v1137 = vmax.f32 %v971, 0.0
        %v1138 = vmax.f32 %v976, 0.0
        %v1139 = vmax.f32 %v981, 0.0
        %v1140 = vmax.f32 %v986, 0.0
        %v1141 = vmax.f32 %v991, 0.0
        %v1142 = vmax.f32 %v996, 0.0
        %v1143 = vmax.f32 %v1001, 0.0
        %v1144 = vmax.f32 %v1006, 0.0
        %v1145 = vmax.f32 %v1011, 0.0
        %v1146 = vmax.f32 %v1016, 0.0
        %v1147 = vmax.f32 %v1021, 0.0
        %v1148 = vmax.f32 %v1026, 0.0
        %v1149 = vmax.f32 %v1031, 0.0
        %v1150 = vmax.f32 %v1036, 0.0
        %v1151 = vmax.f32 %v1041, 0.0
        %v1152 = vmax.f32 %v1046, 0.0
        %v1153 = vmax.f32 %v1051, 0.0
        %v1154 = vmax.f32 %v1056, 0.0
        %v1155 = vmax.f32 %v1061, 0.0
        %v1156 = vmax.f32 %v1066, 0.0
        %v1157 = vmax.f32 %v1071, 0.0
        %v1158 = vmax.f32 %v1076, 0.0
        %v1159 = vmax.f32 %v1081, 0.0
        %v1160 = vmax.f32 %v1086, 0.0
        %v1161 = vmax.f32 %v1091, 0.0
        %v1162 = vmax.f32 %v1096, 0.0
        %v1163 = vmax.f32 %v1101, 0.0
        %v1164 = vmax.f32 %v1106, 0.0
        %v1165 = vmax.f32 %v1111, 0.0
        %v1166 = vmax.f32 %v1116, 0.0
        %v1167 = vld [vmem:[#allocation2 + $0xa8] sm:$0xff]
        %v1168 = vld [vmem:[#allocation2 + $0xb0] sm:$0xff]
        %v1169 = vld [vmem:[#allocation2 + $0xb8] sm:$0xff]
        %v1170 = vld [vmem:[#allocation2 + $0xc0] sm:$0xff]
        %v1171 = vld [vmem:[#allocation2 + $0xc8] sm:$0xff]
        %v1172 = vld [vmem:[#allocation2 + $0xd0] sm:$0xff]
        %v1173 = vld [vmem:[#allocation2 + $0xd8] sm:$0xff]
        %v1174 = vld [vmem:[#allocation2 + $0xe0] sm:$0xff]
        %v1175 = vld [vmem:[#allocation2 + $0xe8] sm:$0xff]
        %v1176 = vld [vmem:[#allocation2 + $0xf0] sm:$0xff]
        %v1177 = vld [vmem:[#allocation2 + $0xf8] sm:$0xff]
        %v1178 = vld [vmem:[#allocation2 + $0x100] sm:$0xff]
        %v1179 = vld [vmem:[#allocation2 + $0x108] sm:$0xff]
        %v1180 = vld [vmem:[#allocation2 + $0x110] sm:$0xff]
        %v1181 = vld [vmem:[#allocation2 + $0x118] sm:$0xff]
        %v1182 = vld [vmem:[#allocation2 + $0x120] sm:$0xff]
        %s1184 = vtos %v456
        %v1185 = vstv %s1184
        %1187 = vmatprep.subr.mxu0 0.0
        %1188 = vmatpush1.msra.mxu0 %v1167
        %1189 = vmatprep.subr.mxu0 0.0
        %1190 = vmatpush1.msra.mxu0 %v1168
        %1191 = vmatprep.subr.mxu0 0.0
        %1192 = vmatpush1.msra.mxu0 %v1169
        %1193 = vmatprep.subr.mxu0 0.0
        %1194 = vmatpush1.msra.mxu0 %v1170
        %1195 = vmatprep.subr.mxu0 0.0
        %1196 = vmatpush1.msra.mxu0 %v1171
        %1197 = vmatprep.subr.mxu0 0.0
        %1198 = vmatpush1.msra.mxu0 %v1172
        %1199 = vmatprep.subr.mxu0 0.0
        %1200 = vmatpush1.msra.mxu0 %v1173
        %1201 = vmatprep.subr.mxu0 0.0
        %1202 = vmatpush1.msra.mxu0 %v1174
        %1203 = vmatprep.subr.mxu0 0.0
        %1204 = vmatpush1.msra.mxu0 %v1175
        %1205 = vmatprep.subr.mxu0 0.0
        %1206 = vmatpush1.msra.mxu0 %v1176
        %1207 = vmatprep.subr.mxu0 0.0
        %1208 = vmatpush1.msra.mxu0 %v1177
        %1209 = vmatprep.subr.mxu0 0.0
        %1210 = vmatpush1.msra.mxu0 %v1178
        %1211 = vmatprep.subr.mxu0 0.0
        %1212 = vmatpush1.msra.mxu0 %v1179
        %1213 = vmatprep.subr.mxu0 0.0
        %1214 = vmatpush1.msra.mxu0 %v1180
        %1215 = vmatprep.subr.mxu0 0.0
        %1216 = vmatpush1.msra.mxu0 %v1181
        %1217 = vmatprep.subr.mxu0 0.0
        %1218 = vmatpush1.msra.mxu0 %v1182
        %1219 = vmatprep.subr.mxu0 0.0
        %1220 = vmatpush1.msra.mxu0 0.0
        %1221 = vmatprep.subr.mxu0 0.0
        %1222 = vmatpush1.msra.mxu0 0.0
        %1223 = vmatprep.subr.mxu0 0.0
        %1224 = vmatpush1.msra.mxu0 0.0
        %1225 = vmatprep.subr.mxu0 0.0
        %1226 = vmatpush1.msra.mxu0 0.0
        %1227 = vmatprep.subr.mxu0 0.0
        %1228 = vmatpush1.msra.mxu0 0.0
        %1229 = vmatprep.subr.mxu0 0.0
        %1230 = vmatpush1.msra.mxu0 0.0
        %1231 = vmatprep.subr.mxu0 0.0
        %1232 = vmatpush1.msra.mxu0 0.0
        %1233 = vmatprep.subr.mxu0 0.0
        %1234 = vmatpush1.msra.mxu0 0.0
        %1235 = vmatprep.subr.mxu0 0.0
        %1236 = vmatpush1.msra.mxu0 0.0
        %1237 = vmatprep.subr.mxu0 0.0
        %1238 = vmatpush1.msra.mxu0 0.0
        %1239 = vmatprep.subr.mxu0 0.0
        %1240 = vmatpush1.msra.mxu0 0.0
        %1241 = vmatprep.subr.mxu0 0.0
        %1242 = vmatpush1.msra.mxu0 0.0
        %1243 = vmatprep.subr.mxu0 0.0
        %1244 = vmatpush1.msra.mxu0 0.0
        %1245 = vmatprep.subr.mxu0 0.0
        %1246 = vmatpush1.msra.mxu0 0.0
        %1247 = vmatprep.subr.mxu0 0.0
        %1248 = vmatpush1.msra.mxu0 0.0
        %1249 = vmatprep.subr.mxu0 0.0
        %1250 = vmatpush1.msra.mxu0 0.0
        %1251 = vmatprep.mubr.f32.mxu0 0.0
        %1252 = vmatmul.mubr.f32.gmra.mrb[0].mxu0 %v1119
        %v1253 = vpop.f32.mrb[0].mxu0
        %v1254 = vadd.f32 %v1185, %v1253
        %v1255 = vpop.f32.mrb[0].mxu0
        %1256 = vmatprep.mubr.f32.mxu0 0.0
        %1257 = vmatmul.mubr.f32.gmra.mrb[0].mxu0 %v1120
        %v1258 = vpop.f32.mrb[0].mxu0
        %v1259 = vadd.f32 %v1185, %v1258
        %v1260 = vpop.f32.mrb[0].mxu0
        %1261 = vmatprep.mubr.f32.mxu0 0.0
        %1262 = vmatmul.mubr.f32.gmra.mrb[0].mxu0 %v1121
        %v1263 = vpop.f32.mrb[0].mxu0
        %v1264 = vadd.f32 %v1185, %v1263
        %v1265 = vpop.f32.mrb[0].mxu0
        %1266 = vmatprep.mubr.f32.mxu0 0.0
        %1267 = vmatmul.mubr.f32.gmra.mrb[0].mxu0 %v1122
        %v1268 = vpop.f32.mrb[0].mxu0
        %v1269 = vadd.f32 %v1185, %v1268
        %v1270 = vpop.f32.mrb[0].mxu0
        %1271 = vmatprep.mubr.f32.mxu0 0.0
        %1272 = vmatmul.mubr.f32.gmra.mrb[0].mxu0 %v1123
        %v1273 = vpop.f32.mrb[0].mxu0
        %v1274 = vadd.f32 %v1185, %v1273
        %v1275 = vpop.f32.mrb[0].mxu0
        %1276 = vmatprep.mubr.f32.mxu0 0.0
        %1277 = vmatmul.mubr.f32.gmra.mrb[0].mxu0 %v1124
        %v1278 = vpop.f32.mrb[0].mxu0
        %v1279 = vadd.f32 %v1185, %v1278
        %v1280 = vpop.f32.mrb[0].mxu0
        %1281 = vmatprep.mubr.f32.mxu0 0.0
        %1282 = vmatmul.mubr.f32.gmra.mrb[0].mxu0 %v1125
        %v1283 = vpop.f32.mrb[0].mxu0
        %v1284 = vadd.f32 %v1185, %v1283
        %v1285 = vpop.f32.mrb[0].mxu0
        %1286 = vmatprep.mubr.f32.mxu0 0.0
        %1287 = vmatmul.mubr.f32.gmra.mrb[0].mxu0 %v1126
        %v1288 = vpop.f32.mrb[0].mxu0
        %v1289 = vadd.f32 %v1185, %v1288
        %v1290 = vpop.f32.mrb[0].mxu0
        %1291 = vmatprep.mubr.f32.mxu0 0.0
        %1292 = vmatmul.mubr.f32.gmra.mrb[0].mxu0 %v1127
        %v1293 = vpop.f32.mrb[0].mxu0
        %v1294 = vadd.f32 %v1185, %v1293
        %v1295 = vpop.f32.mrb[0].mxu0
        %1296 = vmatprep.mubr.f32.mxu0 0.0
        %1297 = vmatmul.mubr.f32.gmra.mrb[0].mxu0 %v1128
        %v1298 = vpop.f32.mrb[0].mxu0
        %v1299 = vadd.f32 %v1185, %v1298
        %v1300 = vpop.f32.mrb[0].mxu0
        %1301 = vmatprep.mubr.f32.mxu0 0.0
        %1302 = vmatmul.mubr.f32.gmra.mrb[0].mxu0 %v1129
        %v1303 = vpop.f32.mrb[0].mxu0
        %v1304 = vadd.f32 %v1185, %v1303
        %v1305 = vpop.f32.mrb[0].mxu0
        %1306 = vmatprep.mubr.f32.mxu0 0.0
        %1307 = vmatmul.mubr.f32.gmra.mrb[0].mxu0 %v1130
        %v1308 = vpop.f32.mrb[0].mxu0
        %v1309 = vadd.f32 %v1185, %v1308
        %v1310 = vpop.f32.mrb[0].mxu0
        %1311 = vmatprep.mubr.f32.mxu0 0.0
        %1312 = vmatmul.mubr.f32.gmra.mrb[0].mxu0 %v1131
        %v1313 = vpop.f32.mrb[0].mxu0
        %v1314 = vadd.f32 %v1185, %v1313
        %v1315 = vpop.f32.mrb[0].mxu0
        %1316 = vmatprep.mubr.f32.mxu0 0.0
        %1317 = vmatmul.mubr.f32.gmra.mrb[0].mxu0 %v1132
        %v1318 = vpop.f32.mrb[0].mxu0
        %v1319 = vadd.f32 %v1185, %v1318
        %v1320 = vpop.f32.mrb[0].mxu0
        %1321 = vmatprep.mubr.f32.mxu0 0.0
        %1322 = vmatmul.mubr.f32.gmra.mrb[0].mxu0 %v1133
        %v1323 = vpop.f32.mrb[0].mxu0
        %v1324 = vadd.f32 %v1185, %v1323
        %v1325 = vpop.f32.mrb[0].mxu0
        %1326 = vmatprep.mubr.f32.mxu0 0.0
        %1327 = vmatmul.mubr.f32.gmra.mrb[0].mxu0 %v1134
        %v1328 = vpop.f32.mrb[0].mxu0
        %v1329 = vadd.f32 %v1185, %v1328
        %v1330 = vpop.f32.mrb[0].mxu0
        %1331 = vmatprep.mubr.f32.mxu0 0.0
        %1332 = vmatmul.mubr.f32.gmra.mrb[0].mxu0 %v1135
        %v1333 = vpop.f32.mrb[0].mxu0
        %v1334 = vadd.f32 %v1185, %v1333
        %v1335 = vpop.f32.mrb[0].mxu0
        %1336 = vmatprep.mubr.f32.mxu0 0.0
        %1337 = vmatmul.mubr.f32.gmra.mrb[0].mxu0 %v1136
        %v1338 = vpop.f32.mrb[0].mxu0
        %v1339 = vadd.f32 %v1185, %v1338
        %v1340 = vpop.f32.mrb[0].mxu0
        %1341 = vmatprep.mubr.f32.mxu0 0.0
        %1342 = vmatmul.mubr.f32.gmra.mrb[0].mxu0 %v1137
        %v1343 = vpop.f32.mrb[0].mxu0
        %v1344 = vadd.f32 %v1185, %v1343
        %v1345 = vpop.f32.mrb[0].mxu0
        %1346 = vmatprep.mubr.f32.mxu0 0.0
        %1347 = vmatmul.mubr.f32.gmra.mrb[0].mxu0 %v1138
        %v1348 = vpop.f32.mrb[0].mxu0
        %v1349 = vadd.f32 %v1185, %v1348
        %v1350 = vpop.f32.mrb[0].mxu0
        %1351 = vmatprep.mubr.f32.mxu0 0.0
        %1352 = vmatmul.mubr.f32.gmra.mrb[0].mxu0 %v1139
        %v1353 = vpop.f32.mrb[0].mxu0
        %v1354 = vadd.f32 %v1185, %v1353
        %v1355 = vpop.f32.mrb[0].mxu0
        %1356 = vmatprep.mubr.f32.mxu0 0.0
        %1357 = vmatmul.mubr.f32.gmra.mrb[0].mxu0 %v1140
        %v1358 = vpop.f32.mrb[0].mxu0
        %v1359 = vadd.f32 %v1185, %v1358
        %v1360 = vpop.f32.mrb[0].mxu0
        %1361 = vmatprep.mubr.f32.mxu0 0.0
        %1362 = vmatmul.mubr.f32.gmra.mrb[0].mxu0 %v1141
        %v1363 = vpop.f32.mrb[0].mxu0
        %v1364 = vadd.f32 %v1185, %v1363
        %v1365 = vpop.f32.mrb[0].mxu0
        %1366 = vmatprep.mubr.f32.mxu0 0.0
        %1367 = vmatmul.mubr.f32.gmra.mrb[0].mxu0 %v1142
        %v1368 = vpop.f32.mrb[0].mxu0
        %v1369 = vadd.f32 %v1185, %v1368
        %v1370 = vpop.f32.mrb[0].mxu0
        %1371 = vmatprep.mubr.f32.mxu0 0.0
        %1372 = vmatmul.mubr.f32.gmra.mrb[0].mxu0 %v1143
        %v1373 = vpop.f32.mrb[0].mxu0
        %v1374 = vadd.f32 %v1185, %v1373
        %v1375 = vpop.f32.mrb[0].mxu0
        %1376 = vmatprep.mubr.f32.mxu0 0.0
        %1377 = vmatmul.mubr.f32.gmra.mrb[0].mxu0 %v1144
        %v1378 = vpop.f32.mrb[0].mxu0
        %v1379 = vadd.f32 %v1185, %v1378
        %v1380 = vpop.f32.mrb[0].mxu0
        %1381 = vmatprep.mubr.f32.mxu0 0.0
        %1382 = vmatmul.mubr.f32.gmra.mrb[0].mxu0 %v1145
        %v1383 = vpop.f32.mrb[0].mxu0
        %v1384 = vadd.f32 %v1185, %v1383
        %v1385 = vpop.f32.mrb[0].mxu0
        %1386 = vmatprep.mubr.f32.mxu0 0.0
        %1387 = vmatmul.mubr.f32.gmra.mrb[0].mxu0 %v1146
        %v1388 = vpop.f32.mrb[0].mxu0
        %v1389 = vadd.f32 %v1185, %v1388
        %v1390 = vpop.f32.mrb[0].mxu0
        %1391 = vmatprep.mubr.f32.mxu0 0.0
        %1392 = vmatmul.mubr.f32.gmra.mrb[0].mxu0 %v1147
        %v1393 = vpop.f32.mrb[0].mxu0
        %v1394 = vadd.f32 %v1185, %v1393
        %v1395 = vpop.f32.mrb[0].mxu0
        %1396 = vmatprep.mubr.f32.mxu0 0.0
        %1397 = vmatmul.mubr.f32.gmra.mrb[0].mxu0 %v1148
        %v1398 = vpop.f32.mrb[0].mxu0
        %v1399 = vadd.f32 %v1185, %v1398
        %v1400 = vpop.f32.mrb[0].mxu0
        %1401 = vmatprep.mubr.f32.mxu0 0.0
        %1402 = vmatmul.mubr.f32.gmra.mrb[0].mxu0 %v1149
        %v1403 = vpop.f32.mrb[0].mxu0
        %v1404 = vadd.f32 %v1185, %v1403
        %v1405 = vpop.f32.mrb[0].mxu0
        %1406 = vmatprep.mubr.f32.mxu0 0.0
        %1407 = vmatmul.mubr.f32.gmra.mrb[0].mxu0 %v1150
        %v1408 = vpop.f32.mrb[0].mxu0
        %v1409 = vadd.f32 %v1185, %v1408
        %v1410 = vpop.f32.mrb[0].mxu0
        %1411 = vmatprep.mubr.f32.mxu0 0.0
        %1412 = vmatmul.mubr.f32.gmra.mrb[0].mxu0 %v1151
        %v1413 = vpop.f32.mrb[0].mxu0
        %v1414 = vadd.f32 %v1185, %v1413
        %v1415 = vpop.f32.mrb[0].mxu0
        %1416 = vmatprep.mubr.f32.mxu0 0.0
        %1417 = vmatmul.mubr.f32.gmra.mrb[0].mxu0 %v1152
        %v1418 = vpop.f32.mrb[0].mxu0
        %v1419 = vadd.f32 %v1185, %v1418
        %v1420 = vpop.f32.mrb[0].mxu0
        %1421 = vmatprep.mubr.f32.mxu0 0.0
        %1422 = vmatmul.mubr.f32.gmra.mrb[0].mxu0 %v1153
        %v1423 = vpop.f32.mrb[0].mxu0
        %v1424 = vadd.f32 %v1185, %v1423
        %v1425 = vpop.f32.mrb[0].mxu0
        %1426 = vmatprep.mubr.f32.mxu0 0.0
        %1427 = vmatmul.mubr.f32.gmra.mrb[0].mxu0 %v1154
        %v1428 = vpop.f32.mrb[0].mxu0
        %v1429 = vadd.f32 %v1185, %v1428
        %v1430 = vpop.f32.mrb[0].mxu0
        %1431 = vmatprep.mubr.f32.mxu0 0.0
        %1432 = vmatmul.mubr.f32.gmra.mrb[0].mxu0 %v1155
        %v1433 = vpop.f32.mrb[0].mxu0
        %v1434 = vadd.f32 %v1185, %v1433
        %v1435 = vpop.f32.mrb[0].mxu0
        %1436 = vmatprep.mubr.f32.mxu0 0.0
        %1437 = vmatmul.mubr.f32.gmra.mrb[0].mxu0 %v1156
        %v1438 = vpop.f32.mrb[0].mxu0
        %v1439 = vadd.f32 %v1185, %v1438
        %v1440 = vpop.f32.mrb[0].mxu0
        %1441 = vmatprep.mubr.f32.mxu0 0.0
        %1442 = vmatmul.mubr.f32.gmra.mrb[0].mxu0 %v1157
        %v1443 = vpop.f32.mrb[0].mxu0
        %v1444 = vadd.f32 %v1185, %v1443
        %v1445 = vpop.f32.mrb[0].mxu0
        %1446 = vmatprep.mubr.f32.mxu0 0.0
        %1447 = vmatmul.mubr.f32.gmra.mrb[0].mxu0 %v1158
        %v1448 = vpop.f32.mrb[0].mxu0
        %v1449 = vadd.f32 %v1185, %v1448
        %v1450 = vpop.f32.mrb[0].mxu0
        %1451 = vmatprep.mubr.f32.mxu0 0.0
        %1452 = vmatmul.mubr.f32.gmra.mrb[0].mxu0 %v1159
        %v1453 = vpop.f32.mrb[0].mxu0
        %v1454 = vadd.f32 %v1185, %v1453
        %v1455 = vpop.f32.mrb[0].mxu0
        %1456 = vmatprep.mubr.f32.mxu0 0.0
        %1457 = vmatmul.mubr.f32.gmra.mrb[0].mxu0 %v1160
        %v1458 = vpop.f32.mrb[0].mxu0
        %v1459 = vadd.f32 %v1185, %v1458
        %v1460 = vpop.f32.mrb[0].mxu0
        %1461 = vmatprep.mubr.f32.mxu0 0.0
        %1462 = vmatmul.mubr.f32.gmra.mrb[0].mxu0 %v1161
        %v1463 = vpop.f32.mrb[0].mxu0
        %v1464 = vadd.f32 %v1185, %v1463
        %v1465 = vpop.f32.mrb[0].mxu0
        %1466 = vmatprep.mubr.f32.mxu0 0.0
        %1467 = vmatmul.mubr.f32.gmra.mrb[0].mxu0 %v1162
        %v1468 = vpop.f32.mrb[0].mxu0
        %v1469 = vadd.f32 %v1185, %v1468
        %v1470 = vpop.f32.mrb[0].mxu0
        %1471 = vmatprep.mubr.f32.mxu0 0.0
        %1472 = vmatmul.mubr.f32.gmra.mrb[0].mxu0 %v1163
        %v1473 = vpop.f32.mrb[0].mxu0
        %v1474 = vadd.f32 %v1185, %v1473
        %v1475 = vpop.f32.mrb[0].mxu0
        %1476 = vmatprep.mubr.f32.mxu0 0.0
        %1477 = vmatmul.mubr.f32.gmra.mrb[0].mxu0 %v1164
        %v1478 = vpop.f32.mrb[0].mxu0
        %v1479 = vadd.f32 %v1185, %v1478
        %v1480 = vpop.f32.mrb[0].mxu0
        %1481 = vmatprep.mubr.f32.mxu0 0.0
        %1482 = vmatmul.mubr.f32.gmra.mrb[0].mxu0 %v1165
        %v1483 = vpop.f32.mrb[0].mxu0
        %v1484 = vadd.f32 %v1185, %v1483
        %v1485 = vpop.f32.mrb[0].mxu0
        %1486 = vmatprep.mubr.f32.mxu0 0.0
        %1487 = vmatmul.mubr.f32.gmra.mrb[0].mxu0 %v1166
        %v1488 = vpop.f32.mrb[0].mxu0
        %v1489 = vadd.f32 %v1185, %v1488
        %v1490 = vpop.f32.mrb[0].mxu0
        %1491 = vdwg.mxu0
        %vm1492 = vcmp.gt.f32.partialorder %v1254, 0.0
        %vm1493 = vcmp.gt.f32.partialorder %v1259, 0.0
        %vm1494 = vcmp.gt.f32.partialorder %v1264, 0.0
        %vm1495 = vcmp.gt.f32.partialorder %v1269, 0.0
        %vm1496 = vcmp.gt.f32.partialorder %v1274, 0.0
        %vm1497 = vcmp.gt.f32.partialorder %v1279, 0.0
        %vm1498 = vcmp.gt.f32.partialorder %v1284, 0.0
        %vm1499 = vcmp.gt.f32.partialorder %v1289, 0.0
        %vm1500 = vcmp.gt.f32.partialorder %v1294, 0.0
        %vm1501 = vcmp.gt.f32.partialorder %v1299, 0.0
        %vm1502 = vcmp.gt.f32.partialorder %v1304, 0.0
        %vm1503 = vcmp.gt.f32.partialorder %v1309, 0.0
        %vm1504 = vcmp.gt.f32.partialorder %v1314, 0.0
        %vm1505 = vcmp.gt.f32.partialorder %v1319, 0.0
        %vm1506 = vcmp.gt.f32.partialorder %v1324, 0.0
        %vm1507 = vcmp.gt.f32.partialorder %v1329, 0.0
        %vm1508 = vcmp.gt.f32.partialorder %v1334, 0.0
        %vm1509 = vcmp.gt.f32.partialorder %v1339, 0.0
        %vm1510 = vcmp.gt.f32.partialorder %v1344, 0.0
        %vm1511 = vcmp.gt.f32.partialorder %v1349, 0.0
        %vm1512 = vcmp.gt.f32.partialorder %v1354, 0.0
        %vm1513 = vcmp.gt.f32.partialorder %v1359, 0.0
        %vm1514 = vcmp.gt.f32.partialorder %v1364, 0.0
        %vm1515 = vcmp.gt.f32.partialorder %v1369, 0.0
        %vm1516 = vcmp.gt.f32.partialorder %v1374, 0.0
        %vm1517 = vcmp.gt.f32.partialorder %v1379, 0.0
        %vm1518 = vcmp.gt.f32.partialorder %v1384, 0.0
        %vm1519 = vcmp.gt.f32.partialorder %v1389, 0.0
        %vm1520 = vcmp.gt.f32.partialorder %v1394, 0.0
        %vm1521 = vcmp.gt.f32.partialorder %v1399, 0.0
        %vm1522 = vcmp.gt.f32.partialorder %v1404, 0.0
        %vm1523 = vcmp.gt.f32.partialorder %v1409, 0.0
        %vm1524 = vcmp.gt.f32.partialorder %v1414, 0.0
        %vm1525 = vcmp.gt.f32.partialorder %v1419, 0.0
        %vm1526 = vcmp.gt.f32.partialorder %v1424, 0.0
        %vm1527 = vcmp.gt.f32.partialorder %v1429, 0.0
        %vm1528 = vcmp.gt.f32.partialorder %v1434, 0.0
        %vm1529 = vcmp.gt.f32.partialorder %v1439, 0.0
        %vm1530 = vcmp.gt.f32.partialorder %v1444, 0.0
        %vm1531 = vcmp.gt.f32.partialorder %v1449, 0.0
        %vm1532 = vcmp.gt.f32.partialorder %v1454, 0.0
        %vm1533 = vcmp.gt.f32.partialorder %v1459, 0.0
        %vm1534 = vcmp.gt.f32.partialorder %v1464, 0.0
        %vm1535 = vcmp.gt.f32.partialorder %v1469, 0.0
        %vm1536 = vcmp.gt.f32.partialorder %v1474, 0.0
        %vm1537 = vcmp.gt.f32.partialorder %v1479, 0.0
        %vm1538 = vcmp.gt.f32.partialorder %v1484, 0.0
        %vm1539 = vcmp.gt.f32.partialorder %v1489, 0.0
        %v1540 = vmin.f32 %v1254, 0.0
        %v1541 = vmin.f32 %v1259, 0.0
        %v1542 = vmin.f32 %v1264, 0.0
        %v1543 = vmin.f32 %v1269, 0.0
        %v1544 = vmin.f32 %v1274, 0.0
        %v1545 = vmin.f32 %v1279, 0.0
        %v1546 = vmin.f32 %v1284, 0.0
        %v1547 = vmin.f32 %v1289, 0.0
        %v1548 = vmin.f32 %v1294, 0.0
        %v1549 = vmin.f32 %v1299, 0.0
        %v1550 = vmin.f32 %v1304, 0.0
        %v1551 = vmin.f32 %v1309, 0.0
        %v1552 = vmin.f32 %v1314, 0.0
        %v1553 = vmin.f32 %v1319, 0.0
        %v1554 = vmin.f32 %v1324, 0.0
        %v1555 = vmin.f32 %v1329, 0.0
        %v1556 = vmin.f32 %v1334, 0.0
        %v1557 = vmin.f32 %v1339, 0.0
        %v1558 = vmin.f32 %v1344, 0.0
        %v1559 = vmin.f32 %v1349, 0.0
        %v1560 = vmin.f32 %v1354, 0.0
        %v1561 = vmin.f32 %v1359, 0.0
        %v1562 = vmin.f32 %v1364, 0.0
        %v1563 = vmin.f32 %v1369, 0.0
        %v1564 = vmin.f32 %v1374, 0.0
        %v1565 = vmin.f32 %v1379, 0.0
        %v1566 = vmin.f32 %v1384, 0.0
        %v1567 = vmin.f32 %v1389, 0.0
        %v1568 = vmin.f32 %v1394, 0.0
        %v1569 = vmin.f32 %v1399, 0.0
        %v1570 = vmin.f32 %v1404, 0.0
        %v1571 = vmin.f32 %v1409, 0.0
        %v1572 = vmin.f32 %v1414, 0.0
        %v1573 = vmin.f32 %v1419, 0.0
        %v1574 = vmin.f32 %v1424, 0.0
        %v1575 = vmin.f32 %v1429, 0.0
        %v1576 = vmin.f32 %v1434, 0.0
        %v1577 = vmin.f32 %v1439, 0.0
        %v1578 = vmin.f32 %v1444, 0.0
        %v1579 = vmin.f32 %v1449, 0.0
        %v1580 = vmin.f32 %v1454, 0.0
        %v1581 = vmin.f32 %v1459, 0.0
        %v1582 = vmin.f32 %v1464, 0.0
        %v1583 = vmin.f32 %v1469, 0.0
        %v1584 = vmin.f32 %v1474, 0.0
        %v1585 = vmin.f32 %v1479, 0.0
        %v1586 = vmin.f32 %v1484, 0.0
        %v1587 = vmin.f32 %v1489, 0.0
        %v1588 = vmul.f32 %v1540, 1.442695
        %v1589 = vpow.pop %v1588
        %v1590 = vmul.f32 %v1541, 1.442695
        %v1591 = vpow.pop %v1590
        %v1592 = vmul.f32 %v1542, 1.442695
        %v1593 = vpow.pop %v1592
        %v1594 = vmul.f32 %v1543, 1.442695
        %v1595 = vpow.pop %v1594
        %v1596 = vmul.f32 %v1544, 1.442695
        %v1597 = vpow.pop %v1596
        %v1598 = vmul.f32 %v1545, 1.442695
        %v1599 = vpow.pop %v1598
        %v1600 = vmul.f32 %v1546, 1.442695
        %v1601 = vpow.pop %v1600
        %v1602 = vmul.f32 %v1547, 1.442695
        %v1603 = vpow.pop %v1602
        %v1604 = vmul.f32 %v1548, 1.442695
        %v1605 = vpow.pop %v1604
        %v1606 = vmul.f32 %v1549, 1.442695
        %v1607 = vpow.pop %v1606
        %v1608 = vmul.f32 %v1550, 1.442695
        %v1609 = vpow.pop %v1608
        %v1610 = vmul.f32 %v1551, 1.442695
        %v1611 = vpow.pop %v1610
        %v1612 = vmul.f32 %v1552, 1.442695
        %v1613 = vpow.pop %v1612
        %v1614 = vmul.f32 %v1553, 1.442695
        %v1615 = vpow.pop %v1614
        %v1616 = vmul.f32 %v1554, 1.442695
        %v1617 = vpow.pop %v1616
        %v1618 = vmul.f32 %v1555, 1.442695
        %v1619 = vpow.pop %v1618
        %v1620 = vmul.f32 %v1556, 1.442695
        %v1621 = vpow.pop %v1620
        %v1622 = vmul.f32 %v1557, 1.442695
        %v1623 = vpow.pop %v1622
        %v1624 = vmul.f32 %v1558, 1.442695
        %v1625 = vpow.pop %v1624
        %v1626 = vmul.f32 %v1559, 1.442695
        %v1627 = vpow.pop %v1626
        %v1628 = vmul.f32 %v1560, 1.442695
        %v1629 = vpow.pop %v1628
        %v1630 = vmul.f32 %v1561, 1.442695
        %v1631 = vpow.pop %v1630
        %v1632 = vmul.f32 %v1562, 1.442695
        %v1633 = vpow.pop %v1632
        %v1634 = vmul.f32 %v1563, 1.442695
        %v1635 = vpow.pop %v1634
        %v1636 = vmul.f32 %v1564, 1.442695
        %v1637 = vpow.pop %v1636
        %v1638 = vmul.f32 %v1565, 1.442695
        %v1639 = vpow.pop %v1638
        %v1640 = vmul.f32 %v1566, 1.442695
        %v1641 = vpow.pop %v1640
        %v1642 = vmul.f32 %v1567, 1.442695
        %v1643 = vpow.pop %v1642
        %v1644 = vmul.f32 %v1568, 1.442695
        %v1645 = vpow.pop %v1644
        %v1646 = vmul.f32 %v1569, 1.442695
        %v1647 = vpow.pop %v1646
        %v1648 = vmul.f32 %v1570, 1.442695
        %v1649 = vpow.pop %v1648
        %v1650 = vmul.f32 %v1571, 1.442695
        %v1651 = vpow.pop %v1650
        %v1652 = vmul.f32 %v1572, 1.442695
        %v1653 = vpow.pop %v1652
        %v1654 = vmul.f32 %v1573, 1.442695
        %v1655 = vpow.pop %v1654
        %v1656 = vmul.f32 %v1574, 1.442695
        %v1657 = vpow.pop %v1656
        %v1658 = vmul.f32 %v1575, 1.442695
        %v1659 = vpow.pop %v1658
        %v1660 = vmul.f32 %v1576, 1.442695
        %v1661 = vpow.pop %v1660
        %v1662 = vmul.f32 %v1577, 1.442695
        %v1663 = vpow.pop %v1662
        %v1664 = vmul.f32 %v1578, 1.442695
        %v1665 = vpow.pop %v1664
        %v1666 = vmul.f32 %v1579, 1.442695
        %v1667 = vpow.pop %v1666
        %v1668 = vmul.f32 %v1580, 1.442695
        %v1669 = vpow.pop %v1668
        %v1670 = vmul.f32 %v1581, 1.442695
        %v1671 = vpow.pop %v1670
        %v1672 = vmul.f32 %v1582, 1.442695
        %v1673 = vpow.pop %v1672
        %v1674 = vmul.f32 %v1583, 1.442695
        %v1675 = vpow.pop %v1674
        %v1676 = vmul.f32 %v1584, 1.442695
        %v1677 = vpow.pop %v1676
        %v1678 = vmul.f32 %v1585, 1.442695
        %v1679 = vpow.pop %v1678
        %v1680 = vmul.f32 %v1586, 1.442695
        %v1681 = vpow.pop %v1680
        %v1682 = vmul.f32 %v1587, 1.442695
        %v1683 = vpow.pop %v1682
        %v1684 = vsub.f32 %v1589, 1.0
        %v1685 = vsub.f32 %v1591, 1.0
        %v1686 = vsub.f32 %v1593, 1.0
        %v1687 = vsub.f32 %v1595, 1.0
        %v1688 = vsub.f32 %v1597, 1.0
        %v1689 = vsub.f32 %v1599, 1.0
        %v1690 = vsub.f32 %v1601, 1.0
        %v1691 = vsub.f32 %v1603, 1.0
        %v1692 = vsub.f32 %v1605, 1.0
        %v1693 = vsub.f32 %v1607, 1.0
        %v1694 = vsub.f32 %v1609, 1.0
        %v1695 = vsub.f32 %v1611, 1.0
        %v1696 = vsub.f32 %v1613, 1.0
        %v1697 = vsub.f32 %v1615, 1.0
        %v1698 = vsub.f32 %v1617, 1.0
        %v1699 = vsub.f32 %v1619, 1.0
        %v1700 = vsub.f32 %v1621, 1.0
        %v1701 = vsub.f32 %v1623, 1.0
        %v1702 = vsub.f32 %v1625, 1.0
        %v1703 = vsub.f32 %v1627, 1.0
        %v1704 = vsub.f32 %v1629, 1.0
        %v1705 = vsub.f32 %v1631, 1.0
        %v1706 = vsub.f32 %v1633, 1.0
        %v1707 = vsub.f32 %v1635, 1.0
        %v1708 = vsub.f32 %v1637, 1.0
        %v1709 = vsub.f32 %v1639, 1.0
        %v1710 = vsub.f32 %v1641, 1.0
        %v1711 = vsub.f32 %v1643, 1.0
        %v1712 = vsub.f32 %v1645, 1.0
        %v1713 = vsub.f32 %v1647, 1.0
        %v1714 = vsub.f32 %v1649, 1.0
        %v1715 = vsub.f32 %v1651, 1.0
        %v1716 = vsub.f32 %v1653, 1.0
        %v1717 = vsub.f32 %v1655, 1.0
        %v1718 = vsub.f32 %v1657, 1.0
        %v1719 = vsub.f32 %v1659, 1.0
        %v1720 = vsub.f32 %v1661, 1.0
        %v1721 = vsub.f32 %v1663, 1.0
        %v1722 = vsub.f32 %v1665, 1.0
        %v1723 = vsub.f32 %v1667, 1.0
        %v1724 = vsub.f32 %v1669, 1.0
        %v1725 = vsub.f32 %v1671, 1.0
        %v1726 = vsub.f32 %v1673, 1.0
        %v1727 = vsub.f32 %v1675, 1.0
        %v1728 = vsub.f32 %v1677, 1.0
        %v1729 = vsub.f32 %v1679, 1.0
        %v1730 = vsub.f32 %v1681, 1.0
        %v1731 = vsub.f32 %v1683, 1.0
        %v1732 = vsel %vm1492, %v1254, %v1684
        %v1733 = vsel %vm1493, %v1259, %v1685
        %v1734 = vsel %vm1494, %v1264, %v1686
        %v1735 = vsel %vm1495, %v1269, %v1687
        %v1736 = vsel %vm1496, %v1274, %v1688
        %v1737 = vsel %vm1497, %v1279, %v1689
        %v1738 = vsel %vm1498, %v1284, %v1690
        %v1739 = vsel %vm1499, %v1289, %v1691
        %v1740 = vsel %vm1500, %v1294, %v1692
        %v1741 = vsel %vm1501, %v1299, %v1693
        %v1742 = vsel %vm1502, %v1304, %v1694
        %v1743 = vsel %vm1503, %v1309, %v1695
        %v1744 = vsel %vm1504, %v1314, %v1696
        %v1745 = vsel %vm1505, %v1319, %v1697
        %v1746 = vsel %vm1506, %v1324, %v1698
        %v1747 = vsel %vm1507, %v1329, %v1699
        %v1748 = vsel %vm1508, %v1334, %v1700
        %v1749 = vsel %vm1509, %v1339, %v1701
        %v1750 = vsel %vm1510, %v1344, %v1702
        %v1751 = vsel %vm1511, %v1349, %v1703
        %v1752 = vsel %vm1512, %v1354, %v1704
        %v1753 = vsel %vm1513, %v1359, %v1705
        %v1754 = vsel %vm1514, %v1364, %v1706
        %v1755 = vsel %vm1515, %v1369, %v1707
        %v1756 = vsel %vm1516, %v1374, %v1708
        %v1757 = vsel %vm1517, %v1379, %v1709
        %v1758 = vsel %vm1518, %v1384, %v1710
        %v1759 = vsel %vm1519, %v1389, %v1711
        %v1760 = vsel %vm1520, %v1394, %v1712
        %v1761 = vsel %vm1521, %v1399, %v1713
        %v1762 = vsel %vm1522, %v1404, %v1714
        %v1763 = vsel %vm1523, %v1409, %v1715
        %v1764 = vsel %vm1524, %v1414, %v1716
        %v1765 = vsel %vm1525, %v1419, %v1717
        %v1766 = vsel %vm1526, %v1424, %v1718
        %v1767 = vsel %vm1527, %v1429, %v1719
        %v1768 = vsel %vm1528, %v1434, %v1720
        %v1769 = vsel %vm1529, %v1439, %v1721
        %v1770 = vsel %vm1530, %v1444, %v1722
        %v1771 = vsel %vm1531, %v1449, %v1723
        %v1772 = vsel %vm1532, %v1454, %v1724
        %v1773 = vsel %vm1533, %v1459, %v1725
        %v1774 = vsel %vm1534, %v1464, %v1726
        %v1775 = vsel %vm1535, %v1469, %v1727
        %v1776 = vsel %vm1536, %v1474, %v1728
        %v1777 = vsel %vm1537, %v1479, %v1729
        %v1778 = vsel %vm1538, %v1484, %v1730
        %v1779 = vsel %vm1539, %v1489, %v1731
        %v1780 = vadd.f32 %v1732, 1.0
        %v1781 = vadd.f32 %v1733, 1.0
        %v1782 = vadd.f32 %v1734, 1.0
        %v1783 = vadd.f32 %v1735, 1.0
        %v1784 = vadd.f32 %v1736, 1.0
        %v1785 = vadd.f32 %v1737, 1.0
        %v1786 = vadd.f32 %v1738, 1.0
        %v1787 = vadd.f32 %v1739, 1.0
        %v1788 = vadd.f32 %v1740, 1.0
        %v1789 = vadd.f32 %v1741, 1.0
        %v1790 = vadd.f32 %v1742, 1.0
        %v1791 = vadd.f32 %v1743, 1.0
        %v1792 = vadd.f32 %v1744, 1.0
        %v1793 = vadd.f32 %v1745, 1.0
        %v1794 = vadd.f32 %v1746, 1.0
        %v1795 = vadd.f32 %v1747, 1.0
        %v1796 = vadd.f32 %v1748, 1.0
        %v1797 = vadd.f32 %v1749, 1.0
        %v1798 = vadd.f32 %v1750, 1.0
        %v1799 = vadd.f32 %v1751, 1.0
        %v1800 = vadd.f32 %v1752, 1.0
        %v1801 = vadd.f32 %v1753, 1.0
        %v1802 = vadd.f32 %v1754, 1.0
        %v1803 = vadd.f32 %v1755, 1.0
        %v1804 = vadd.f32 %v1756, 1.0
        %v1805 = vadd.f32 %v1757, 1.0
        %v1806 = vadd.f32 %v1758, 1.0
        %v1807 = vadd.f32 %v1759, 1.0
        %v1808 = vadd.f32 %v1760, 1.0
        %v1809 = vadd.f32 %v1761, 1.0
        %v1810 = vadd.f32 %v1762, 1.0
        %v1811 = vadd.f32 %v1763, 1.0
        %v1812 = vadd.f32 %v1764, 1.0
        %v1813 = vadd.f32 %v1765, 1.0
        %v1814 = vadd.f32 %v1766, 1.0
        %v1815 = vadd.f32 %v1767, 1.0
        %v1816 = vadd.f32 %v1768, 1.0
        %v1817 = vadd.f32 %v1769, 1.0
        %v1818 = vadd.f32 %v1770, 1.0
        %v1819 = vadd.f32 %v1771, 1.0
        %v1820 = vadd.f32 %v1772, 1.0
        %v1821 = vadd.f32 %v1773, 1.0
        %v1822 = vadd.f32 %v1774, 1.0
        %v1823 = vadd.f32 %v1775, 1.0
        %v1824 = vadd.f32 %v1776, 1.0
        %v1825 = vadd.f32 %v1777, 1.0
        %v1826 = vadd.f32 %v1778, 1.0
        %v1827 = vadd.f32 %v1779, 1.0
        %v1828 = vld [vmem:[%s3] sm:$0x1]
        %v1829 = vld [vmem:[%s3 + $0x1] sm:$0x1]
        %v1830 = vld [vmem:[%s3 + $0x2] sm:$0x1]
        %v1831 = vld [vmem:[%s3 + $0x3] sm:$0x1]
        %v1832 = vld [vmem:[%s3 + $0x4] sm:$0x1]
        %v1833 = vld [vmem:[%s3 + $0x5] sm:$0x1]
        %v1834 = vld [vmem:[%s3 + $0x6] sm:$0x1]
        %v1835 = vld [vmem:[%s3 + $0x7] sm:$0x1]
        %v1836 = vld [vmem:[%s3 + $0x8] sm:$0x1]
        %v1837 = vld [vmem:[%s3 + $0x9] sm:$0x1]
        %v1838 = vld [vmem:[%s3 + $0xa] sm:$0x1]
        %v1839 = vld [vmem:[%s3 + $0xb] sm:$0x1]
        %v1840 = vld [vmem:[%s3 + $0xc] sm:$0x1]
        %v1841 = vld [vmem:[%s3 + $0xd] sm:$0x1]
        %v1842 = vld [vmem:[%s3 + $0xe] sm:$0x1]
        %v1843 = vld [vmem:[%s3 + $0xf] sm:$0x1]
        %v1860 = vlaneseq
        %v1861 = vshrl.u32 %v1860, 7
        %v1862 = vsub.s32 0, %v1861
        %v1863 = vrot.slane %v1828, %v1862
        %v1864 = vlaneseq
        %v1865 = vshrl.u32 %v1864, 7
        %v1866 = vsub.s32 0, %v1865
        %v1867 = vrot.slane %v1829, %v1866
        %v1868 = vlaneseq
        %v1869 = vshrl.u32 %v1868, 7
        %v1870 = vsub.s32 0, %v1869
        %v1871 = vrot.slane %v1830, %v1870
        %v1872 = vlaneseq
        %v1873 = vshrl.u32 %v1872, 7
        %v1874 = vsub.s32 0, %v1873
        %v1875 = vrot.slane %v1831, %v1874
        %v1876 = vlaneseq
        %v1877 = vshrl.u32 %v1876, 7
        %v1878 = vsub.s32 0, %v1877
        %v1879 = vrot.slane %v1832, %v1878
        %v1880 = vlaneseq
        %v1881 = vshrl.u32 %v1880, 7
        %v1882 = vsub.s32 0, %v1881
        %v1883 = vrot.slane %v1833, %v1882
        %v1884 = vlaneseq
        %v1885 = vshrl.u32 %v1884, 7
        %v1886 = vsub.s32 0, %v1885
        %v1887 = vrot.slane %v1834, %v1886
        %v1888 = vlaneseq
        %v1889 = vshrl.u32 %v1888, 7
        %v1890 = vsub.s32 0, %v1889
        %v1891 = vrot.slane %v1835, %v1890
        %v1892 = vlaneseq
        %v1893 = vshrl.u32 %v1892, 7
        %v1894 = vsub.s32 0, %v1893
        %v1895 = vrot.slane %v1836, %v1894
        %v1896 = vlaneseq
        %v1897 = vshrl.u32 %v1896, 7
        %v1898 = vsub.s32 0, %v1897
        %v1899 = vrot.slane %v1837, %v1898
        %v1900 = vlaneseq
        %v1901 = vshrl.u32 %v1900, 7
        %v1902 = vsub.s32 0, %v1901
        %v1903 = vrot.slane %v1838, %v1902
        %v1904 = vlaneseq
        %v1905 = vshrl.u32 %v1904, 7
        %v1906 = vsub.s32 0, %v1905
        %v1907 = vrot.slane %v1839, %v1906
        %v1908 = vlaneseq
        %v1909 = vshrl.u32 %v1908, 7
        %v1910 = vsub.s32 0, %v1909
        %v1911 = vrot.slane %v1840, %v1910
        %v1912 = vlaneseq
        %v1913 = vshrl.u32 %v1912, 7
        %v1914 = vsub.s32 0, %v1913
        %v1915 = vrot.slane %v1841, %v1914
        %v1916 = vlaneseq
        %v1917 = vshrl.u32 %v1916, 7
        %v1918 = vsub.s32 0, %v1917
        %v1919 = vrot.slane %v1842, %v1918
        %v1920 = vlaneseq
        %v1921 = vshrl.u32 %v1920, 7
        %v1922 = vsub.s32 0, %v1921
        %v1923 = vrot.slane %v1843, %v1922
        %v1940 = vmul.f32 %v1780, %v1863
        %v1941 = vmul.f32 %v1781, %v1863
        %v1942 = vmul.f32 %v1782, %v1863
        %v1943 = vmul.f32 %v1783, %v1867
        %v1944 = vmul.f32 %v1784, %v1867
        %v1945 = vmul.f32 %v1785, %v1867
        %v1946 = vmul.f32 %v1786, %v1871
        %v1947 = vmul.f32 %v1787, %v1871
        %v1948 = vmul.f32 %v1788, %v1871
        %v1949 = vmul.f32 %v1789, %v1875
        %v1950 = vmul.f32 %v1790, %v1875
        %v1951 = vmul.f32 %v1791, %v1875
        %v1952 = vmul.f32 %v1792, %v1879
        %v1953 = vmul.f32 %v1793, %v1879
        %v1954 = vmul.f32 %v1794, %v1879
        %v1955 = vmul.f32 %v1795, %v1883
        %v1956 = vmul.f32 %v1796, %v1883
        %v1957 = vmul.f32 %v1797, %v1883
        %v1958 = vmul.f32 %v1798, %v1887
        %v1959 = vmul.f32 %v1799, %v1887
        %v1960 = vmul.f32 %v1800, %v1887
        %v1961 = vmul.f32 %v1801, %v1891
        %v1962 = vmul.f32 %v1802, %v1891
        %v1963 = vmul.f32 %v1803, %v1891
        %v1964 = vmul.f32 %v1804, %v1895
        %v1965 = vmul.f32 %v1805, %v1895
        %v1966 = vmul.f32 %v1806, %v1895
        %v1967 = vmul.f32 %v1807, %v1899
        %v1968 = vmul.f32 %v1808, %v1899
        %v1969 = vmul.f32 %v1809, %v1899
        %v1970 = vmul.f32 %v1810, %v1903
        %v1971 = vmul.f32 %v1811, %v1903
        %v1972 = vmul.f32 %v1812, %v1903
        %v1973 = vmul.f32 %v1813, %v1907
        %v1974 = vmul.f32 %v1814, %v1907
        %v1975 = vmul.f32 %v1815, %v1907
        %v1976 = vmul.f32 %v1816, %v1911
        %v1977 = vmul.f32 %v1817, %v1911
        %v1978 = vmul.f32 %v1818, %v1911
        %v1979 = vmul.f32 %v1819, %v1915
        %v1980 = vmul.f32 %v1820, %v1915
        %v1981 = vmul.f32 %v1821, %v1915
        %v1982 = vmul.f32 %v1822, %v1919
        %v1983 = vmul.f32 %v1823, %v1919
        %v1984 = vmul.f32 %v1824, %v1919
        %v1985 = vmul.f32 %v1825, %v1923
        %v1986 = vmul.f32 %v1826, %v1923
        %v1987 = vmul.f32 %v1827, %v1923
        %vm1988 = vcmask 31744
        %v1989 = vsel %vm1988, %v1940, 0.0
        %v1990 = vsel %vm1988, %v1943, 0.0
        %v1991 = vadd.f32 %v1989, %v1990
        %v1992 = vsel %vm1988, %v1946, 0.0
        %v1993 = vadd.f32 %v1991, %v1992
        %v1994 = vsel %vm1988, %v1949, 0.0
        %v1995 = vadd.f32 %v1993, %v1994
        %v1996 = vsel %vm1988, %v1952, 0.0
        %v1997 = vadd.f32 %v1995, %v1996
        %v1998 = vsel %vm1988, %v1955, 0.0
        %v1999 = vadd.f32 %v1997, %v1998
        %v2000 = vsel %vm1988, %v1958, 0.0
        %v2001 = vadd.f32 %v1999, %v2000
        %v2002 = vsel %vm1988, %v1961, 0.0
        %v2003 = vadd.f32 %v2001, %v2002
        %v2004 = vsel %vm1988, %v1964, 0.0
        %v2005 = vadd.f32 %v2003, %v2004
        %v2006 = vsel %vm1988, %v1967, 0.0
        %v2007 = vadd.f32 %v2005, %v2006
        %v2008 = vsel %vm1988, %v1970, 0.0
        %v2009 = vadd.f32 %v2007, %v2008
        %v2010 = vsel %vm1988, %v1973, 0.0
        %v2011 = vadd.f32 %v2009, %v2010
        %v2012 = vsel %vm1988, %v1976, 0.0
        %v2013 = vadd.f32 %v2011, %v2012
        %v2014 = vsel %vm1988, %v1979, 0.0
        %v2015 = vadd.f32 %v2013, %v2014
        %v2016 = vsel %vm1988, %v1982, 0.0
        %v2017 = vadd.f32 %v2015, %v2016
        %v2018 = vsel %vm1988, %v1985, 0.0
        %v2019 = vadd.f32 %v2017, %v2018
        %v2020 = vsel %vm1988, %v1941, 0.0
        %v2021 = vsel %vm1988, %v1944, 0.0
        %v2022 = vadd.f32 %v2020, %v2021
        %v2023 = vsel %vm1988, %v1947, 0.0
        %v2024 = vadd.f32 %v2022, %v2023
        %v2025 = vsel %vm1988, %v1950, 0.0
        %v2026 = vadd.f32 %v2024, %v2025
        %v2027 = vsel %vm1988, %v1953, 0.0
        %v2028 = vadd.f32 %v2026, %v2027
        %v2029 = vsel %vm1988, %v1956, 0.0
        %v2030 = vadd.f32 %v2028, %v2029
        %v2031 = vsel %vm1988, %v1959, 0.0
        %v2032 = vadd.f32 %v2030, %v2031
        %v2033 = vsel %vm1988, %v1962, 0.0
        %v2034 = vadd.f32 %v2032, %v2033
        %v2035 = vsel %vm1988, %v1965, 0.0
        %v2036 = vadd.f32 %v2034, %v2035
        %v2037 = vsel %vm1988, %v1968, 0.0
        %v2038 = vadd.f32 %v2036, %v2037
        %v2039 = vsel %vm1988, %v1971, 0.0
        %v2040 = vadd.f32 %v2038, %v2039
        %v2041 = vsel %vm1988, %v1974, 0.0
        %v2042 = vadd.f32 %v2040, %v2041
        %v2043 = vsel %vm1988, %v1977, 0.0
        %v2044 = vadd.f32 %v2042, %v2043
        %v2045 = vsel %vm1988, %v1980, 0.0
        %v2046 = vadd.f32 %v2044, %v2045
        %v2047 = vsel %vm1988, %v1983, 0.0
        %v2048 = vadd.f32 %v2046, %v2047
        %v2049 = vsel %vm1988, %v1986, 0.0
        %v2050 = vadd.f32 %v2048, %v2049
        %v2051 = vsel %vm1988, %v1942, 0.0
        %v2052 = vsel %vm1988, %v1945, 0.0
        %v2053 = vadd.f32 %v2051, %v2052
        %v2054 = vsel %vm1988, %v1948, 0.0
        %v2055 = vadd.f32 %v2053, %v2054
        %v2056 = vsel %vm1988, %v1951, 0.0
        %v2057 = vadd.f32 %v2055, %v2056
        %v2058 = vsel %vm1988, %v1954, 0.0
        %v2059 = vadd.f32 %v2057, %v2058
        %v2060 = vsel %vm1988, %v1957, 0.0
        %v2061 = vadd.f32 %v2059, %v2060
        %v2062 = vsel %vm1988, %v1960, 0.0
        %v2063 = vadd.f32 %v2061, %v2062
        %v2064 = vsel %vm1988, %v1963, 0.0
        %v2065 = vadd.f32 %v2063, %v2064
        %v2066 = vsel %vm1988, %v1966, 0.0
        %v2067 = vadd.f32 %v2065, %v2066
        %v2068 = vsel %vm1988, %v1969, 0.0
        %v2069 = vadd.f32 %v2067, %v2068
        %v2070 = vsel %vm1988, %v1972, 0.0
        %v2071 = vadd.f32 %v2069, %v2070
        %v2072 = vsel %vm1988, %v1975, 0.0
        %v2073 = vadd.f32 %v2071, %v2072
        %v2074 = vsel %vm1988, %v1978, 0.0
        %v2075 = vadd.f32 %v2073, %v2074
        %v2076 = vsel %vm1988, %v1981, 0.0
        %v2077 = vadd.f32 %v2075, %v2076
        %v2078 = vsel %vm1988, %v1984, 0.0
        %v2079 = vadd.f32 %v2077, %v2078
        %v2080 = vsel %vm1988, %v1987, 0.0
        %v2081 = vadd.f32 %v2079, %v2080
        %v2082 = vsel %vm1988, %v2019, 0.0
        %2083 = vadd.xlane.f32.xlu0 %v2082
        %v2084 = vpop.xlane.xlu0 %2083
        %v2085 = vsel %vm1988, %v2050, 0.0
        %2086 = vadd.xlane.f32.xlu0 %v2085
        %v2087 = vpop.xlane.xlu0 %2086
        %v2088 = vsel %vm1988, %v2081, 0.0
        %2089 = vadd.xlane.f32.xlu0 %v2088
        %v2090 = vpop.xlane.xlu0 %2089
        %v2091 = vmul.f32 %v2084, %v250
        %v2092 = vmul.f32 %v2087, %v251
        %v2093 = vmul.f32 %v2090, %v252
        %v2094 = vmul.f32 %v2091, 0.5
        %v2095 = vmul.f32 %v2092, 0.5
        %v2096 = vmul.f32 %v2093, 0.5
        %2100 = vrot.lane.b32.xlu0 %v461, 127
        %v2101 = vpop.permute.xlu0 %2100
        %2102 = vrot.lane.b32.xlu0 %v462, 127
        %v2103 = vpop.permute.xlu0 %2102
        %2104 = vrot.lane.b32.xlu0 %v463, 127
        %v2105 = vpop.permute.xlu0 %2104
        %v2109 = vadd.f32 %v2094, %v2101
        %v2110 = vadd.f32 %v2095, %v2103
        %v2111 = vadd.f32 %v2096, %v2105
        %vm2112 = vcmask 7168
        %2113 = vst.msk [vmem:[%s246] sm:$0xff] %vm2112, %v2109
        %2114 = vst.msk [vmem:[%s246 + $0x8] sm:$0xff] %vm2112, %v2110
        %2115 = vst.msk [vmem:[%s246 + $0x10] sm:$0xff] %vm2112, %v2111
        %s2116 = smul.u32 3, %s18
        %p2117 = scmp.lt.s32.totalorder %s2116, 5
        %s2118 = scalar_select %p2117, %s2116, 5
        %s2119 = smul.addr %s2118, 8
        %s2120 = scalar_lea.vmem %s6, %s2119
        // Predicated region
        $region49: #{tpu_custom_call.1} parent=43 // pred_check
          %p2121 = pneg %p162
        $region50: #{tpu_custom_call.1} parent=43 // pred_check_branch
          %2123 = sbr.rel (%p2121) target = $region52
        $region51: #{tpu_custom_call.1} parent=43 // pred_region
          %s2124 = smul.u32 3, %s18
        $region52: #{tpu_custom_call.1} parent=43 // pred_fallthru
          _
      $region44: #{tpu_custom_call.1} parent=5 // pred_fallthru
        _
      %p2125 = scmp.le.s32.totalorder 2, %s13
      // Predicated region
      $region53: #{tpu_custom_call.1} parent=5 // pred_check
        %p2126 = pneg %p2125
      $region54: #{tpu_custom_call.1} parent=5 // pred_check_branch
        %2128 = sbr.rel (%p2126) target = $region56
      $region55: #{tpu_custom_call.1} parent=5 // pred_region
        %s2129 = ssub.s32 %s13, 2
        // Predicated region
        $region57: #{tpu_custom_call.1} parent=55 // pred_check
          %p2130 = pneg %p168
        $region58: #{tpu_custom_call.1} parent=55 // pred_check_branch
          %2132 = sbr.rel (%p2130) target = $region60
        $region59: #{tpu_custom_call.1} parent=55 // pred_region
          %s2133 = smul.u32 3, %s19
          %p2134 = scmp.lt.s32.totalorder %s2133, 5
          %s2135 = scalar_select %p2134, %s2133, 5
          %s2136 = smul.addr %s2135, 8
          %s2137 = scalar_lea.vmem %s6, %s2136
        $region60: #{tpu_custom_call.1} parent=55 // pred_fallthru
          _
      $region56: #{tpu_custom_call.1} parent=5 // pred_fallthru
        _
    $region6: #{tpu_custom_call.1} parent=1 // loop_footer
      %s17 = sadd.s32 1, %s13
    $region7: #{tpu_custom_call.1} parent=1 // loop_footer_branch
      %12 = sbr.rel target = $region3
    $region8: #{tpu_custom_call.1} parent=1 // loop_exit
      _
    %2138 = vsyncpa [#allocation3], 1
    %s2139 = scalar_lea.sflag [#allocation3], 1
    %2140 = vsyncpa %s2139, 1

</llo_original>
